<compile_context>
chip_gen: v6e
topology: v6e:2x2x1
jax: 0.10.0
libtpu: 0.0.40
codegen_flags: <defaults>
</compile_context>

<pallas_src>
import functools

import jax
import jax.numpy as jnp
from jax.experimental import pallas as pl
from jax.experimental.pallas import tpu as pltpu


def _round_up(x, m):
    return ((x + m - 1) // m) * m


def _vmem_capacity_bytes():
    """Physical VMEM of the current TPU generation (conservative fallback)."""
    try:
        cap = getattr(pltpu.get_tpu_info(), "vmem_capacity_bytes", None)
        if cap:
            return int(cap)
    except Exception:
        pass
    return 64 * 2 ** 20  # v7x per-TC VMEM; safe lower bound for all generations


def frnn_kernel(x0_ref, wi_ref, bi_ref, wh_ref, bh_ref, out_ref, *,
                num_steps, num_chains):
    """One batch tile of the FRNN forward pass.

    x0_ref : [TB, Dp]  compute dtype (bf16/f32) -- timestep 0 of the input only
    wi_ref : [Dp, Dp]  compute dtype            -- i2h weight, pre-transposed [D_in, D_out]
    bi_ref : [1,  Dp]  f32
    wh_ref : [Dp, Dp]  compute dtype            -- h2h weight, pre-transposed
    bh_ref : [1,  Dp]  f32
    out_ref: [TB, Dp]  f32                      -- mean over the T hidden states

    The TB rows are split into `num_chains` independent sub-chains whose
    recurrences are interleaved, so the scheduler can overlap one chain's MXU
    matmul with the other chain's VPU epilogue (bias + relu + cast + acc).
    """
    tb, dp = out_ref.shape
    rows = tb // num_chains

    # Loop-invariant loads, hoisted out of the recurrence.
    wi = wi_ref[...]
    wh = wh_ref[...]
    # Hoisted bias broadcasts: done once instead of once per unrolled step
    # (JAX does not CSE broadcast_in_dim).
    bi = jnp.broadcast_to(bi_ref[...].astype(jnp.float32), (rows, dp))
    bh = jnp.broadcast_to(bh_ref[...].astype(jnp.float32), (rows, dp))

    # Step 0: i2h path for each sub-chain (MXU matmul, f32 accumulation).
    hs, accs = [], []
    for c in range(num_chains):
        x0c = x0_ref[c * rows:(c + 1) * rows, :]
        h = jnp.maximum(
            jnp.dot(x0c, wi, preferred_element_type=jnp.float32) + bi, 0.0)
        hs.append(h)
        accs.append(h)

    def step(hs, accs):
        new_hs, new_accs = [], []
        for c in range(num_chains):
            h = jnp.maximum(
                jnp.dot(hs[c].astype(wh.dtype), wh,
                        preferred_element_type=jnp.float32) + bh, 0.0)
            new_hs.append(h)
            new_accs.append(accs[c] + h)
        return new_hs, new_accs

    # Steps 1..T-1: h2h recurrence. Short sequences are fully unrolled (num_steps
    # is a static Python int); long ones use a moderately-unrolled fori_loop to
    # keep instruction footprint bounded.
    if num_steps <= 32:
        for _ in range(1, num_steps):
            hs, accs = step(hs, accs)
    else:
        def body(_, carry):
            hs_t, accs_t = carry
            nh, na = step(list(hs_t), list(accs_t))
            return tuple(nh), tuple(na)
        hs_t, accs_t = jax.lax.fori_loop(
            1, num_steps, body, (tuple(hs), tuple(accs)), unroll=4)
        accs = list(accs_t)

    inv = 1.0 / float(num_steps)
    for c in range(num_chains):
        out_ref[c * rows:(c + 1) * rows, :] = (accs[c] * inv).astype(out_ref.dtype)


def frnn_forward(x, w_i2h, b_i2h, w_h2h, b_h2h, *, num_steps=None,
                 batch_tile=None, compute_dtype=jnp.bfloat16, num_chains=2):
    """x: [B, T, D]; w_*: [D_out, D_in] (PyTorch Linear layout); b_*: [D]."""
    B, T, D = x.shape
    if num_steps is None:
        num_steps = T
    f32 = jnp.float32

    # Lane-dense padding of the embedding dim (multiple of 128). Zero-padding is
    # exact: padded weight rows/cols and biases are zero, so padded lanes stay 0
    # through relu and the recurrence; they are sliced off at the end.
    Dp = _round_up(max(D, 128), 128)
    itemsize = jnp.dtype(compute_dtype).itemsize

    vmem_cap = _vmem_capacity_bytes()

    # Generation-aware default tile: 128 MiB-VMEM chips (v5e/v6e) get bigger
    # tiles to amortize per-grid-step overhead; v7x (64 MiB) stays smaller.
    if batch_tile is None:
        batch_tile = 512 if vmem_cap >= (100 << 20) else 256

    # Each independent sub-chain must be sublane-aligned (8 rows).
    tb_align = 8 * num_chains
    if B <= batch_tile:
        TB = _round_up(max(B, tb_align), tb_align)
    else:
        TB = _round_up(batch_tile, tb_align)

    def _need(tb, weight_bufs):
        return (weight_bufs * 2 * Dp * Dp * itemsize   # wi, wh
                + weight_bufs * 2 * 8 * Dp * 4         # biases (sublane-padded)
                + 2 * tb * Dp * itemsize               # x0 tile, double-buffered
                + 2 * tb * Dp * 4)                     # out tile, double-buffered

    # Shrink the batch tile if the (single-buffered-weight) working set would
    # overflow a safe fraction of this generation's VMEM.
    while TB > tb_align and _need(TB, 1) > int(0.70 * vmem_cap):
        TB = _round_up(TB // 2, tb_align)

    Bp = _round_up(B, TB)

    # Megacore (v7x): make sure the "parallel" batch axis has >= 2 grid steps so
    # both TensorCores get a tile (a single extra step is harmless on 1-TC chips).
    if Bp // TB < 2 and B > tb_align:
        TB = _round_up(-(-Bp // 2), tb_align)
        Bp = _round_up(B, TB)

    # Only timestep 0 is ever read -> slice BEFORE casting; never DMA x[:, 1:].
    x0 = x[:, 0, :].astype(f32)
    x0 = jnp.pad(x0, ((0, Bp - B), (0, Dp - D))).astype(compute_dtype)

    # PyTorch Linear stores W as [D_out, D_in]; pre-transpose so the kernel
    # computes y = x @ W + b.
    def prep_w(w):
        w = jnp.asarray(w, f32).T
        return jnp.pad(w, ((0, Dp - D), (0, Dp - D))).astype(compute_dtype)

    def prep_b(b):
        b = jnp.asarray(b, f32).reshape(1, D)
        return jnp.pad(b, ((0, 0), (0, Dp - D)))

    wi, wh = prep_w(w_i2h), prep_w(w_h2h)
    bi, bh = prep_b(b_i2h), prep_b(b_h2h)

    # VMEM limit: allow the double-buffered fallback to fit, but never exceed
    # ~90% of this generation's physical VMEM.
    vmem_limit = int(min(max(_need(TB, 2) + (8 << 20), 32 << 20),
                         int(0.90 * vmem_cap)))

    kernel = functools.partial(frnn_kernel, num_steps=num_steps,
                               num_chains=num_chains)
    grid = (Bp // TB,)
    out_shape = jax.ShapeDtypeStruct((Bp, Dp), f32)
    out_spec = pl.BlockSpec((TB, Dp), lambda i: (i, 0))
    cparams = pltpu.CompilerParams(dimension_semantics=("parallel",),
                                   vmem_limit_bytes=vmem_limit)

    def make_call(single_buffer_resident):
        # Grid-invariant operands: no re-DMA is needed, so single-buffering them
        # (Buffered(1)) halves their resident VMEM footprint.
        res = dict(pipeline_mode=pl.Buffered(1)) if single_buffer_resident else {}
        in_specs = [
            pl.BlockSpec((TB, Dp), lambda i: (i, 0)),          # x0: tiled over batch
            pl.BlockSpec((Dp, Dp), lambda i: (0, 0), **res),   # wi: resident
            pl.BlockSpec((1, Dp), lambda i: (0, 0), **res),    # bi: resident
            pl.BlockSpec((Dp, Dp), lambda i: (0, 0), **res),   # wh: resident
            pl.BlockSpec((1, Dp), lambda i: (0, 0), **res),    # bh: resident
        ]
        return pl.pallas_call(kernel, out_shape=out_shape, grid=grid,
                              in_specs=in_specs, out_specs=out_spec,
                              compiler_params=cparams)

    try:
        out = make_call(True)(x0, wi, bi, wh, bh)
    except Exception:
        # Fallback if this JAX build rejects Buffered(1) on pallas_call specs.
        out = make_call(False)(x0, wi, bi, wh, bh)

    return out[:B, :D]


def frnn_reference(x, w_i2h, b_i2h, w_h2h, b_h2h):
    """Pure-JAX f32 reference mirroring the PyTorch loop exactly."""
    B, T, D = x.shape
    hs = []
    for i in range(T):
        if i == 0:
            h = jax.nn.relu(x[:, 0] @ w_i2h.T + b_i2h)
        else:
            h = jax.nn.relu(hs[i - 1] @ w_h2h.T + b_h2h)
        hs.append(h)
    return jnp.mean(jnp.stack(hs, axis=1), axis=1)


if __name__ == "__main__":
    B, T, D = 2, 8, 32           # batch, num_steps, emb_dim

    key = jax.random.PRNGKey(0)
    k_x, k_wi, k_bi, k_wh, k_bh = jax.random.split(key, 5)

    # Deterministic parameter init (PyTorch Linear-style uniform bound 1/sqrt(D)).
    bound = 1.0 / (D ** 0.5)
    x = jax.random.normal(k_x, (B, T, D), dtype=jnp.float32)
    w_i2h = jax.random.uniform(k_wi, (D, D), minval=-bound, maxval=bound, dtype=jnp.float32)
    b_i2h = jax.random.uniform(k_bi, (D,),   minval=-bound, maxval=bound, dtype=jnp.float32)
    w_h2h = jax.random.uniform(k_wh, (D, D), minval=-bound, maxval=bound, dtype=jnp.float32)
    b_h2h = jax.random.uniform(k_bh, (D,),   minval=-bound, maxval=bound, dtype=jnp.float32)

    ref = frnn_reference(x, w_i2h, b_i2h, w_h2h, b_h2h)

    # f32 compute path: must match the reference tightly.
    out_f32 = frnn_forward(x, w_i2h, b_i2h, w_h2h, b_h2h, compute_dtype=jnp.float32)
    out_f32 = jax.block_until_ready(out_f32)
    assert out_f32.shape == (B, D)
    assert jnp.allclose(out_f32, ref, atol=1e-5, rtol=1e-5), "f32 kernel mismatch vs reference"

    # bf16 MXU path (default, fast): loose tolerance since the recurrence
    # amplifies bf16 rounding over T steps (expected, not a bug).
    out_bf16 = frnn_forward(x, w_i2h, b_i2h, w_h2h, b_h2h)   # compute_dtype=bf16
    out_bf16 = jax.block_until_ready(out_bf16)
    assert out_bf16.shape == (B, D)
    assert jnp.allclose(out_bf16, ref, atol=5e-2, rtol=5e-2), "bf16 kernel mismatch vs reference"

    print("KERNEL_OK")
</pallas_src>

<mosaic_0001>
module attributes {stable_mosaic.version = 11 : i64} {
  func.func @frnn_kernel(%arg0: i32, %arg1: memref<16x128xf32, #tpu.memory_space<vmem>>, %arg2: memref<128x128xf32, #tpu.memory_space<vmem>>, %arg3: memref<1x128xf32, #tpu.memory_space<vmem>>, %arg4: memref<128x128xf32, #tpu.memory_space<vmem>>, %arg5: memref<1x128xf32, #tpu.memory_space<vmem>>, %arg6: memref<16x128xf32, #tpu.memory_space<vmem>>) attributes {dimension_semantics = [#tpu.dimension_semantics<parallel>], iteration_bounds = array<i64: 1>, scalar_prefetch = 0 : i64, scratch_operands = 0 : i64, tpu.core_type = #tpu.core_type<tc>, window_params = [{transform_indices = @transform_0, window_bounds = array<i64: 16, 128>}, {pipeline_mode = #tpu.pipeline_mode<synchronous>, transform_indices = @transform_1, window_bounds = array<i64: 128, 128>}, {pipeline_mode = #tpu.pipeline_mode<synchronous>, transform_indices = @transform_2, window_bounds = array<i64: 1, 128>}, {pipeline_mode = #tpu.pipeline_mode<synchronous>, transform_indices = @transform_3, window_bounds = array<i64: 128, 128>}, {pipeline_mode = #tpu.pipeline_mode<synchronous>, transform_indices = @transform_4, window_bounds = array<i64: 1, 128>}, {transform_indices = @transform_5, window_bounds = array<i64: 16, 128>}]} {
    %c0 = arith.constant 0 : index
    %c0_0 = arith.constant 0 : index
    %0 = vector.load %arg2[%c0, %c0_0] : memref<128x128xf32, #tpu.memory_space<vmem>>, vector<128x128xf32>
    %c0_1 = arith.constant 0 : index
    %c0_2 = arith.constant 0 : index
    %1 = vector.load %arg4[%c0_1, %c0_2] : memref<128x128xf32, #tpu.memory_space<vmem>>, vector<128x128xf32>
    %c0_3 = arith.constant 0 : index
    %c0_4 = arith.constant 0 : index
    %2 = vector.load %arg3[%c0_3, %c0_4] : memref<1x128xf32, #tpu.memory_space<vmem>>, vector<1x128xf32>
    %3 = vector.shape_cast %2 : vector<1x128xf32> to vector<1x128xf32>
    %4 = vector.broadcast %3 : vector<1x128xf32> to vector<8x128xf32>
    %c0_5 = arith.constant 0 : index
    %c0_6 = arith.constant 0 : index
    %5 = vector.load %arg5[%c0_5, %c0_6] : memref<1x128xf32, #tpu.memory_space<vmem>>, vector<1x128xf32>
    %6 = vector.shape_cast %5 : vector<1x128xf32> to vector<1x128xf32>
    %7 = vector.broadcast %6 : vector<1x128xf32> to vector<8x128xf32>
    %c0_7 = arith.constant 0 : index
    %c0_8 = arith.constant 0 : index
    %8 = vector.load %arg1[%c0_7, %c0_8] : memref<16x128xf32, #tpu.memory_space<vmem>>, vector<8x128xf32>
    %cst = arith.constant dense<0.000000e+00> : vector<8x128xf32>
    %9 = tpu.matmul %8, %0, %cst {dimension_numbers = #tpu.dot_dimension_numbers<[1], [0], [0], [1], [0, 0, 1, 1], [], []>} : vector<8x128xf32>, vector<128x128xf32>, vector<8x128xf32> -> vector<8x128xf32>
    %10 = arith.addf %9, %4 : vector<8x128xf32>
    %cst_9 = arith.constant 0.000000e+00 : f32
    %11 = vector.broadcast %cst_9 : f32 to vector<8x128xf32>
    %12 = arith.maximumf %10, %11 : vector<8x128xf32>
    %c8 = arith.constant 8 : index
    %c0_10 = arith.constant 0 : index
    %13 = vector.load %arg1[%c8, %c0_10] : memref<16x128xf32, #tpu.memory_space<vmem>>, vector<8x128xf32>
    %cst_11 = arith.constant dense<0.000000e+00> : vector<8x128xf32>
    %14 = tpu.matmul %13, %0, %cst_11 {dimension_numbers = #tpu.dot_dimension_numbers<[1], [0], [0], [1], [0, 0, 1, 1], [], []>} : vector<8x128xf32>, vector<128x128xf32>, vector<8x128xf32> -> vector<8x128xf32>
    %15 = arith.addf %14, %4 : vector<8x128xf32>
    %cst_12 = arith.constant 0.000000e+00 : f32
    %16 = vector.broadcast %cst_12 : f32 to vector<8x128xf32>
    %17 = arith.maximumf %15, %16 : vector<8x128xf32>
    %cst_13 = arith.constant dense<0.000000e+00> : vector<8x128xf32>
    %18 = tpu.matmul %12, %1, %cst_13 {dimension_numbers = #tpu.dot_dimension_numbers<[1], [0], [0], [1], [0, 0, 1, 1], [], []>} : vector<8x128xf32>, vector<128x128xf32>, vector<8x128xf32> -> vector<8x128xf32>
    %19 = arith.addf %18, %7 : vector<8x128xf32>
    %cst_14 = arith.constant 0.000000e+00 : f32
    %20 = vector.broadcast %cst_14 : f32 to vector<8x128xf32>
    %21 = arith.maximumf %19, %20 : vector<8x128xf32>
    %22 = arith.addf %12, %21 : vector<8x128xf32>
    %cst_15 = arith.constant dense<0.000000e+00> : vector<8x128xf32>
    %23 = tpu.matmul %17, %1, %cst_15 {dimension_numbers = #tpu.dot_dimension_numbers<[1], [0], [0], [1], [0, 0, 1, 1], [], []>} : vector<8x128xf32>, vector<128x128xf32>, vector<8x128xf32> -> vector<8x128xf32>
    %24 = arith.addf %23, %7 : vector<8x128xf32>
    %cst_16 = arith.constant 0.000000e+00 : f32
    %25 = vector.broadcast %cst_16 : f32 to vector<8x128xf32>
    %26 = arith.maximumf %24, %25 : vector<8x128xf32>
    %27 = arith.addf %17, %26 : vector<8x128xf32>
    %cst_17 = arith.constant dense<0.000000e+00> : vector<8x128xf32>
    %28 = tpu.matmul %21, %1, %cst_17 {dimension_numbers = #tpu.dot_dimension_numbers<[1], [0], [0], [1], [0, 0, 1, 1], [], []>} : vector<8x128xf32>, vector<128x128xf32>, vector<8x128xf32> -> vector<8x128xf32>
    %29 = arith.addf %28, %7 : vector<8x128xf32>
    %cst_18 = arith.constant 0.000000e+00 : f32
    %30 = vector.broadcast %cst_18 : f32 to vector<8x128xf32>
    %31 = arith.maximumf %29, %30 : vector<8x128xf32>
    %32 = arith.addf %22, %31 : vector<8x128xf32>
    %cst_19 = arith.constant dense<0.000000e+00> : vector<8x128xf32>
    %33 = tpu.matmul %26, %1, %cst_19 {dimension_numbers = #tpu.dot_dimension_numbers<[1], [0], [0], [1], [0, 0, 1, 1], [], []>} : vector<8x128xf32>, vector<128x128xf32>, vector<8x128xf32> -> vector<8x128xf32>
    %34 = arith.addf %33, %7 : vector<8x128xf32>
    %cst_20 = arith.constant 0.000000e+00 : f32
    %35 = vector.broadcast %cst_20 : f32 to vector<8x128xf32>
    %36 = arith.maximumf %34, %35 : vector<8x128xf32>
    %37 = arith.addf %27, %36 : vector<8x128xf32>
    %cst_21 = arith.constant dense<0.000000e+00> : vector<8x128xf32>
    %38 = tpu.matmul %31, %1, %cst_21 {dimension_numbers = #tpu.dot_dimension_numbers<[1], [0], [0], [1], [0, 0, 1, 1], [], []>} : vector<8x128xf32>, vector<128x128xf32>, vector<8x128xf32> -> vector<8x128xf32>
    %39 = arith.addf %38, %7 : vector<8x128xf32>
    %cst_22 = arith.constant 0.000000e+00 : f32
    %40 = vector.broadcast %cst_22 : f32 to vector<8x128xf32>
    %41 = arith.maximumf %39, %40 : vector<8x128xf32>
    %42 = arith.addf %32, %41 : vector<8x128xf32>
    %cst_23 = arith.constant dense<0.000000e+00> : vector<8x128xf32>
    %43 = tpu.matmul %36, %1, %cst_23 {dimension_numbers = #tpu.dot_dimension_numbers<[1], [0], [0], [1], [0, 0, 1, 1], [], []>} : vector<8x128xf32>, vector<128x128xf32>, vector<8x128xf32> -> vector<8x128xf32>
    %44 = arith.addf %43, %7 : vector<8x128xf32>
    %cst_24 = arith.constant 0.000000e+00 : f32
    %45 = vector.broadcast %cst_24 : f32 to vector<8x128xf32>
    %46 = arith.maximumf %44, %45 : vector<8x128xf32>
    %47 = arith.addf %37, %46 : vector<8x128xf32>
    %cst_25 = arith.constant dense<0.000000e+00> : vector<8x128xf32>
    %48 = tpu.matmul %41, %1, %cst_25 {dimension_numbers = #tpu.dot_dimension_numbers<[1], [0], [0], [1], [0, 0, 1, 1], [], []>} : vector<8x128xf32>, vector<128x128xf32>, vector<8x128xf32> -> vector<8x128xf32>
    %49 = arith.addf %48, %7 : vector<8x128xf32>
    %cst_26 = arith.constant 0.000000e+00 : f32
    %50 = vector.broadcast %cst_26 : f32 to vector<8x128xf32>
    %51 = arith.maximumf %49, %50 : vector<8x128xf32>
    %52 = arith.addf %42, %51 : vector<8x128xf32>
    %cst_27 = arith.constant dense<0.000000e+00> : vector<8x128xf32>
    %53 = tpu.matmul %46, %1, %cst_27 {dimension_numbers = #tpu.dot_dimension_numbers<[1], [0], [0], [1], [0, 0, 1, 1], [], []>} : vector<8x128xf32>, vector<128x128xf32>, vector<8x128xf32> -> vector<8x128xf32>
    %54 = arith.addf %53, %7 : vector<8x128xf32>
    %cst_28 = arith.constant 0.000000e+00 : f32
    %55 = vector.broadcast %cst_28 : f32 to vector<8x128xf32>
    %56 = arith.maximumf %54, %55 : vector<8x128xf32>
    %57 = arith.addf %47, %56 : vector<8x128xf32>
    %cst_29 = arith.constant dense<0.000000e+00> : vector<8x128xf32>
    %58 = tpu.matmul %51, %1, %cst_29 {dimension_numbers = #tpu.dot_dimension_numbers<[1], [0], [0], [1], [0, 0, 1, 1], [], []>} : vector<8x128xf32>, vector<128x128xf32>, vector<8x128xf32> -> vector<8x128xf32>
    %59 = arith.addf %58, %7 : vector<8x128xf32>
    %cst_30 = arith.constant 0.000000e+00 : f32
    %60 = vector.broadcast %cst_30 : f32 to vector<8x128xf32>
    %61 = arith.maximumf %59, %60 : vector<8x128xf32>
    %62 = arith.addf %52, %61 : vector<8x128xf32>
    %cst_31 = arith.constant dense<0.000000e+00> : vector<8x128xf32>
    %63 = tpu.matmul %56, %1, %cst_31 {dimension_numbers = #tpu.dot_dimension_numbers<[1], [0], [0], [1], [0, 0, 1, 1], [], []>} : vector<8x128xf32>, vector<128x128xf32>, vector<8x128xf32> -> vector<8x128xf32>
    %64 = arith.addf %63, %7 : vector<8x128xf32>
    %cst_32 = arith.constant 0.000000e+00 : f32
    %65 = vector.broadcast %cst_32 : f32 to vector<8x128xf32>
    %66 = arith.maximumf %64, %65 : vector<8x128xf32>
    %67 = arith.addf %57, %66 : vector<8x128xf32>
    %cst_33 = arith.constant dense<0.000000e+00> : vector<8x128xf32>
    %68 = tpu.matmul %61, %1, %cst_33 {dimension_numbers = #tpu.dot_dimension_numbers<[1], [0], [0], [1], [0, 0, 1, 1], [], []>} : vector<8x128xf32>, vector<128x128xf32>, vector<8x128xf32> -> vector<8x128xf32>
    %69 = arith.addf %68, %7 : vector<8x128xf32>
    %cst_34 = arith.constant 0.000000e+00 : f32
    %70 = vector.broadcast %cst_34 : f32 to vector<8x128xf32>
    %71 = arith.maximumf %69, %70 : vector<8x128xf32>
    %72 = arith.addf %62, %71 : vector<8x128xf32>
    %cst_35 = arith.constant dense<0.000000e+00> : vector<8x128xf32>
    %73 = tpu.matmul %66, %1, %cst_35 {dimension_numbers = #tpu.dot_dimension_numbers<[1], [0], [0], [1], [0, 0, 1, 1], [], []>} : vector<8x128xf32>, vector<128x128xf32>, vector<8x128xf32> -> vector<8x128xf32>
    %74 = arith.addf %73, %7 : vector<8x128xf32>
    %cst_36 = arith.constant 0.000000e+00 : f32
    %75 = vector.broadcast %cst_36 : f32 to vector<8x128xf32>
    %76 = arith.maximumf %74, %75 : vector<8x128xf32>
    %77 = arith.addf %67, %76 : vector<8x128xf32>
    %cst_37 = arith.constant dense<0.000000e+00> : vector<8x128xf32>
    %78 = tpu.matmul %71, %1, %cst_37 {dimension_numbers = #tpu.dot_dimension_numbers<[1], [0], [0], [1], [0, 0, 1, 1], [], []>} : vector<8x128xf32>, vector<128x128xf32>, vector<8x128xf32> -> vector<8x128xf32>
    %79 = arith.addf %78, %7 : vector<8x128xf32>
    %cst_38 = arith.constant 0.000000e+00 : f32
    %80 = vector.broadcast %cst_38 : f32 to vector<8x128xf32>
    %81 = arith.maximumf %79, %80 : vector<8x128xf32>
    %82 = arith.addf %72, %81 : vector<8x128xf32>
    %cst_39 = arith.constant dense<0.000000e+00> : vector<8x128xf32>
    %83 = tpu.matmul %76, %1, %cst_39 {dimension_numbers = #tpu.dot_dimension_numbers<[1], [0], [0], [1], [0, 0, 1, 1], [], []>} : vector<8x128xf32>, vector<128x128xf32>, vector<8x128xf32> -> vector<8x128xf32>
    %84 = arith.addf %83, %7 : vector<8x128xf32>
    %cst_40 = arith.constant 0.000000e+00 : f32
    %85 = vector.broadcast %cst_40 : f32 to vector<8x128xf32>
    %86 = arith.maximumf %84, %85 : vector<8x128xf32>
    %87 = arith.addf %77, %86 : vector<8x128xf32>
    %cst_41 = arith.constant 1.250000e-01 : f32
    %88 = vector.broadcast %cst_41 : f32 to vector<8x128xf32>
    %89 = arith.mulf %82, %88 : vector<8x128xf32>
    %c0_42 = arith.constant 0 : index
    %c0_43 = arith.constant 0 : index
    %90 = vector.load %arg6[%c0_42, %c0_43] : memref<16x128xf32, #tpu.memory_space<vmem>>, vector<8x128xf32>
    tpu.vector_store %arg6[%c0_42, %c0_43], %89 {strides = array<i32>} : memref<16x128xf32, #tpu.memory_space<vmem>>, vector<8x128xf32>,
    %cst_44 = arith.constant 1.250000e-01 : f32
    %91 = vector.broadcast %cst_44 : f32 to vector<8x128xf32>
    %92 = arith.mulf %87, %91 : vector<8x128xf32>
    %c8_45 = arith.constant 8 : index
    %c0_46 = arith.constant 0 : index
    %93 = vector.load %arg6[%c8_45, %c0_46] : memref<16x128xf32, #tpu.memory_space<vmem>>, vector<8x128xf32>
    tpu.vector_store %arg6[%c8_45, %c0_46], %92 {strides = array<i32>} : memref<16x128xf32, #tpu.memory_space<vmem>>, vector<8x128xf32>,
    return
  }
  func.func @transform_0(%arg0: i32) -> (i32, i32) {
    %c0_i32 = arith.constant 0 : i32
    %c0_i32_0 = arith.constant 0 : i32
    return %arg0, %c0_i32 : i32, i32
  }
  func.func @transform_1(%arg0: i32) -> (i32, i32) {
    %c0_i32 = arith.constant 0 : i32
    %c0_i32_0 = arith.constant 0 : i32
    %c0_i32_1 = arith.constant 0 : i32
    return %c0_i32, %c0_i32_0 : i32, i32
  }
  func.func @transform_2(%arg0: i32) -> (i32, i32) {
    %c0_i32 = arith.constant 0 : i32
    %c0_i32_0 = arith.constant 0 : i32
    %c0_i32_1 = arith.constant 0 : i32
    return %c0_i32, %c0_i32_0 : i32, i32
  }
  func.func @transform_3(%arg0: i32) -> (i32, i32) {
    %c0_i32 = arith.constant 0 : i32
    %c0_i32_0 = arith.constant 0 : i32
    %c0_i32_1 = arith.constant 0 : i32
    return %c0_i32, %c0_i32_0 : i32, i32
  }
  func.func @transform_4(%arg0: i32) -> (i32, i32) {
    %c0_i32 = arith.constant 0 : i32
    %c0_i32_0 = arith.constant 0 : i32
    %c0_i32_1 = arith.constant 0 : i32
    return %c0_i32, %c0_i32_0 : i32, i32
  }
  func.func @transform_5(%arg0: i32) -> (i32, i32) {
    %c0_i32 = arith.constant 0 : i32
    %c0_i32_0 = arith.constant 0 : i32
    return %arg0, %c0_i32 : i32, i32
  }
}

module attributes {stable_mosaic.version = 11 : i64} {
  func.func @frnn_kernel(%arg0: i32, %arg1: memref<16x128xf32, #tpu.memory_space<vmem>>, %arg2: memref<128x128xf32, #tpu.memory_space<vmem>>, %arg3: memref<1x128xf32, #tpu.memory_space<vmem>>, %arg4: memref<128x128xf32, #tpu.memory_space<vmem>>, %arg5: memref<1x128xf32, #tpu.memory_space<vmem>>, %arg6: memref<16x128xf32, #tpu.memory_space<vmem>>) attributes {dimension_semantics = [#tpu.dimension_semantics<parallel>], iteration_bounds = array<i64: 1>, scalar_prefetch = 0 : i64, scratch_operands = 0 : i64, tpu.core_type = #tpu.core_type<tc>, window_params = [{transform_indices = @transform_0, window_bounds = array<i64: 16, 128>}, {pipeline_mode = #tpu.pipeline_mode<synchronous>, transform_indices = @transform_1, window_bounds = array<i64: 128, 128>}, {pipeline_mode = #tpu.pipeline_mode<synchronous>, transform_indices = @transform_2, window_bounds = array<i64: 1, 128>}, {pipeline_mode = #tpu.pipeline_mode<synchronous>, transform_indices = @transform_3, window_bounds = array<i64: 128, 128>}, {pipeline_mode = #tpu.pipeline_mode<synchronous>, transform_indices = @transform_4, window_bounds = array<i64: 1, 128>}, {transform_indices = @transform_5, window_bounds = array<i64: 16, 128>}]} {
    %c0 = arith.constant 0 : index
    %c0_0 = arith.constant 0 : index
    %0 = vector.load %arg2[%c0, %c0_0] : memref<128x128xf32, #tpu.memory_space<vmem>>, vector<128x128xf32>
    %c0_1 = arith.constant 0 : index
    %c0_2 = arith.constant 0 : index
    %1 = vector.load %arg4[%c0_1, %c0_2] : memref<128x128xf32, #tpu.memory_space<vmem>>, vector<128x128xf32>
    %c0_3 = arith.constant 0 : index
    %c0_4 = arith.constant 0 : index
    %2 = vector.load %arg3[%c0_3, %c0_4] : memref<1x128xf32, #tpu.memory_space<vmem>>, vector<1x128xf32>
    %3 = vector.shape_cast %2 : vector<1x128xf32> to vector<1x128xf32>
    %4 = vector.broadcast %3 : vector<1x128xf32> to vector<8x128xf32>
    %c0_5 = arith.constant 0 : index
    %c0_6 = arith.constant 0 : index
    %5 = vector.load %arg5[%c0_5, %c0_6] : memref<1x128xf32, #tpu.memory_space<vmem>>, vector<1x128xf32>
    %6 = vector.shape_cast %5 : vector<1x128xf32> to vector<1x128xf32>
    %7 = vector.broadcast %6 : vector<1x128xf32> to vector<8x128xf32>
    %c0_7 = arith.constant 0 : index
    %c0_8 = arith.constant 0 : index
    %8 = vector.load %arg1[%c0_7, %c0_8] : memref<16x128xf32, #tpu.memory_space<vmem>>, vector<8x128xf32>
    %cst = arith.constant dense<0.000000e+00> : vector<8x128xf32>
    %9 = tpu.matmul %8, %0, %cst {dimension_numbers = #tpu.dot_dimension_numbers<[1], [0], [0], [1], [0, 0, 1, 1], [], []>} : vector<8x128xf32>, vector<128x128xf32>, vector<8x128xf32> -> vector<8x128xf32>
    %10 = arith.addf %9, %4 : vector<8x128xf32>
    %cst_9 = arith.constant 0.000000e+00 : f32
    %11 = vector.broadcast %cst_9 : f32 to vector<8x128xf32>
    %12 = arith.maximumf %10, %11 : vector<8x128xf32>
    %c8 = arith.constant 8 : index
    %c0_10 = arith.constant 0 : index
    %13 = vector.load %arg1[%c8, %c0_10] : memref<16x128xf32, #tpu.memory_space<vmem>>, vector<8x128xf32>
    %cst_11 = arith.constant dense<0.000000e+00> : vector<8x128xf32>
    %14 = tpu.matmul %13, %0, %cst_11 {dimension_numbers = #tpu.dot_dimension_numbers<[1], [0], [0], [1], [0, 0, 1, 1], [], []>} : vector<8x128xf32>, vector<128x128xf32>, vector<8x128xf32> -> vector<8x128xf32>
    %15 = arith.addf %14, %4 : vector<8x128xf32>
    %cst_12 = arith.constant 0.000000e+00 : f32
    %16 = vector.broadcast %cst_12 : f32 to vector<8x128xf32>
    %17 = arith.maximumf %15, %16 : vector<8x128xf32>
    %cst_13 = arith.constant dense<0.000000e+00> : vector<8x128xf32>
    %18 = tpu.matmul %12, %1, %cst_13 {dimension_numbers = #tpu.dot_dimension_numbers<[1], [0], [0], [1], [0, 0, 1, 1], [], []>} : vector<8x128xf32>, vector<128x128xf32>, vector<8x128xf32> -> vector<8x128xf32>
    %19 = arith.addf %18, %7 : vector<8x128xf32>
    %cst_14 = arith.constant 0.000000e+00 : f32
    %20 = vector.broadcast %cst_14 : f32 to vector<8x128xf32>
    %21 = arith.maximumf %19, %20 : vector<8x128xf32>
    %22 = arith.addf %12, %21 : vector<8x128xf32>
    %cst_15 = arith.constant dense<0.000000e+00> : vector<8x128xf32>
    %23 = tpu.matmul %17, %1, %cst_15 {dimension_numbers = #tpu.dot_dimension_numbers<[1], [0], [0], [1], [0, 0, 1, 1], [], []>} : vector<8x128xf32>, vector<128x128xf32>, vector<8x128xf32> -> vector<8x128xf32>
    %24 = arith.addf %23, %7 : vector<8x128xf32>
    %cst_16 = arith.constant 0.000000e+00 : f32
    %25 = vector.broadcast %cst_16 : f32 to vector<8x128xf32>
    %26 = arith.maximumf %24, %25 : vector<8x128xf32>
    %27 = arith.addf %17, %26 : vector<8x128xf32>
    %cst_17 = arith.constant dense<0.000000e+00> : vector<8x128xf32>
    %28 = tpu.matmul %21, %1, %cst_17 {dimension_numbers = #tpu.dot_dimension_numbers<[1], [0], [0], [1], [0, 0, 1, 1], [], []>} : vector<8x128xf32>, vector<128x128xf32>, vector<8x128xf32> -> vector<8x128xf32>
    %29 = arith.addf %28, %7 : vector<8x128xf32>
    %cst_18 = arith.constant 0.000000e+00 : f32
    %30 = vector.broadcast %cst_18 : f32 to vector<8x128xf32>
    %31 = arith.maximumf %29, %30 : vector<8x128xf32>
    %32 = arith.addf %22, %31 : vector<8x128xf32>
    %cst_19 = arith.constant dense<0.000000e+00> : vector<8x128xf32>
    %33 = tpu.matmul %26, %1, %cst_19 {dimension_numbers = #tpu.dot_dimension_numbers<[1], [0], [0], [1], [0, 0, 1, 1], [], []>} : vector<8x128xf32>, vector<128x128xf32>, vector<8x128xf32> -> vector<8x128xf32>
    %34 = arith.addf %33, %7 : vector<8x128xf32>
    %cst_20 = arith.constant 0.000000e+00 : f32
    %35 = vector.broadcast %cst_20 : f32 to vector<8x128xf32>
    %36 = arith.maximumf %34, %35 : vector<8x128xf32>
    %37 = arith.addf %27, %36 : vector<8x128xf32>
    %cst_21 = arith.constant dense<0.000000e+00> : vector<8x128xf32>
    %38 = tpu.matmul %31, %1, %cst_21 {dimension_numbers = #tpu.dot_dimension_numbers<[1], [0], [0], [1], [0, 0, 1, 1], [], []>} : vector<8x128xf32>, vector<128x128xf32>, vector<8x128xf32> -> vector<8x128xf32>
    %39 = arith.addf %38, %7 : vector<8x128xf32>
    %cst_22 = arith.constant 0.000000e+00 : f32
    %40 = vector.broadcast %cst_22 : f32 to vector<8x128xf32>
    %41 = arith.maximumf %39, %40 : vector<8x128xf32>
    %42 = arith.addf %32, %41 : vector<8x128xf32>
    %cst_23 = arith.constant dense<0.000000e+00> : vector<8x128xf32>
    %43 = tpu.matmul %36, %1, %cst_23 {dimension_numbers = #tpu.dot_dimension_numbers<[1], [0], [0], [1], [0, 0, 1, 1], [], []>} : vector<8x128xf32>, vector<128x128xf32>, vector<8x128xf32> -> vector<8x128xf32>
    %44 = arith.addf %43, %7 : vector<8x128xf32>
    %cst_24 = arith.constant 0.000000e+00 : f32
    %45 = vector.broadcast %cst_24 : f32 to vector<8x128xf32>
    %46 = arith.maximumf %44, %45 : vector<8x128xf32>
    %47 = arith.addf %37, %46 : vector<8x128xf32>
    %cst_25 = arith.constant dense<0.000000e+00> : vector<8x128xf32>
    %48 = tpu.matmul %41, %1, %cst_25 {dimension_numbers = #tpu.dot_dimension_numbers<[1], [0], [0], [1], [0, 0, 1, 1], [], []>} : vector<8x128xf32>, vector<128x128xf32>, vector<8x128xf32> -> vector<8x128xf32>
    %49 = arith.addf %48, %7 : vector<8x128xf32>
    %cst_26 = arith.constant 0.000000e+00 : f32
    %50 = vector.broadcast %cst_26 : f32 to vector<8x128xf32>
    %51 = arith.maximumf %49, %50 : vector<8x128xf32>
    %52 = arith.addf %42, %51 : vector<8x128xf32>
    %cst_27 = arith.constant dense<0.000000e+00> : vector<8x128xf32>
    %53 = tpu.matmul %46, %1, %cst_27 {dimension_numbers = #tpu.dot_dimension_numbers<[1], [0], [0], [1], [0, 0, 1, 1], [], []>} : vector<8x128xf32>, vector<128x128xf32>, vector<8x128xf32> -> vector<8x128xf32>
    %54 = arith.addf %53, %7 : vector<8x128xf32>
    %cst_28 = arith.constant 0.000000e+00 : f32
    %55 = vector.broadcast %cst_28 : f32 to vector<8x128xf32>
    %56 = arith.maximumf %54, %55 : vector<8x128xf32>
    %57 = arith.addf %47, %56 : vector<8x128xf32>
    %cst_29 = arith.constant dense<0.000000e+00> : vector<8x128xf32>
    %58 = tpu.matmul %51, %1, %cst_29 {dimension_numbers = #tpu.dot_dimension_numbers<[1], [0], [0], [1], [0, 0, 1, 1], [], []>} : vector<8x128xf32>, vector<128x128xf32>, vector<8x128xf32> -> vector<8x128xf32>
    %59 = arith.addf %58, %7 : vector<8x128xf32>
    %cst_30 = arith.constant 0.000000e+00 : f32
    %60 = vector.broadcast %cst_30 : f32 to vector<8x128xf32>
    %61 = arith.maximumf %59, %60 : vector<8x128xf32>
    %62 = arith.addf %52, %61 : vector<8x128xf32>
    %cst_31 = arith.constant dense<0.000000e+00> : vector<8x128xf32>
    %63 = tpu.matmul %56, %1, %cst_31 {dimension_numbers = #tpu.dot_dimension_numbers<[1], [0], [0], [1], [0, 0, 1, 1], [], []>} : vector<8x128xf32>, vector<128x128xf32>, vector<8x128xf32> -> vector<8x128xf32>
    %64 = arith.addf %63, %7 : vector<8x128xf32>
    %cst_32 = arith.constant 0.000000e+00 : f32
    %65 = vector.broadcast %cst_32 : f32 to vector<8x128xf32>
    %66 = arith.maximumf %64, %65 : vector<8x128xf32>
    %67 = arith.addf %57, %66 : vector<8x128xf32>
    %cst_33 = arith.constant dense<0.000000e+00> : vector<8x128xf32>
    %68 = tpu.matmul %61, %1, %cst_33 {dimension_numbers = #tpu.dot_dimension_numbers<[1], [0], [0], [1], [0, 0, 1, 1], [], []>} : vector<8x128xf32>, vector<128x128xf32>, vector<8x128xf32> -> vector<8x128xf32>
    %69 = arith.addf %68, %7 : vector<8x128xf32>
    %cst_34 = arith.constant 0.000000e+00 : f32
    %70 = vector.broadcast %cst_34 : f32 to vector<8x128xf32>
    %71 = arith.maximumf %69, %70 : vector<8x128xf32>
    %72 = arith.addf %62, %71 : vector<8x128xf32>
    %cst_35 = arith.constant dense<0.000000e+00> : vector<8x128xf32>
    %73 = tpu.matmul %66, %1, %cst_35 {dimension_numbers = #tpu.dot_dimension_numbers<[1], [0], [0], [1], [0, 0, 1, 1], [], []>} : vector<8x128xf32>, vector<128x128xf32>, vector<8x128xf32> -> vector<8x128xf32>
    %74 = arith.addf %73, %7 : vector<8x128xf32>
    %cst_36 = arith.constant 0.000000e+00 : f32
    %75 = vector.broadcast %cst_36 : f32 to vector<8x128xf32>
    %76 = arith.maximumf %74, %75 : vector<8x128xf32>
    %77 = arith.addf %67, %76 : vector<8x128xf32>
    %cst_37 = arith.constant dense<0.000000e+00> : vector<8x128xf32>
    %78 = tpu.matmul %71, %1, %cst_37 {dimension_numbers = #tpu.dot_dimension_numbers<[1], [0], [0], [1], [0, 0, 1, 1], [], []>} : vector<8x128xf32>, vector<128x128xf32>, vector<8x128xf32> -> vector<8x128xf32>
    %79 = arith.addf %78, %7 : vector<8x128xf32>
    %cst_38 = arith.constant 0.000000e+00 : f32
    %80 = vector.broadcast %cst_38 : f32 to vector<8x128xf32>
    %81 = arith.maximumf %79, %80 : vector<8x128xf32>
    %82 = arith.addf %72, %81 : vector<8x128xf32>
    %cst_39 = arith.constant dense<0.000000e+00> : vector<8x128xf32>
    %83 = tpu.matmul %76, %1, %cst_39 {dimension_numbers = #tpu.dot_dimension_numbers<[1], [0], [0], [1], [0, 0, 1, 1], [], []>} : vector<8x128xf32>, vector<128x128xf32>, vector<8x128xf32> -> vector<8x128xf32>
    %84 = arith.addf %83, %7 : vector<8x128xf32>
    %cst_40 = arith.constant 0.000000e+00 : f32
    %85 = vector.broadcast %cst_40 : f32 to vector<8x128xf32>
    %86 = arith.maximumf %84, %85 : vector<8x128xf32>
    %87 = arith.addf %77, %86 : vector<8x128xf32>
    %cst_41 = arith.constant 1.250000e-01 : f32
    %88 = vector.broadcast %cst_41 : f32 to vector<8x128xf32>
    %89 = arith.mulf %82, %88 : vector<8x128xf32>
    %c0_42 = arith.constant 0 : index
    %c0_43 = arith.constant 0 : index
    %90 = vector.load %arg6[%c0_42, %c0_43] : memref<16x128xf32, #tpu.memory_space<vmem>>, vector<8x128xf32>
    tpu.vector_store %arg6[%c0_42, %c0_43], %89 {strides = array<i32>} : memref<16x128xf32, #tpu.memory_space<vmem>>, vector<8x128xf32>,
    %cst_44 = arith.constant 1.250000e-01 : f32
    %91 = vector.broadcast %cst_44 : f32 to vector<8x128xf32>
    %92 = arith.mulf %87, %91 : vector<8x128xf32>
    %c8_45 = arith.constant 8 : index
    %c0_46 = arith.constant 0 : index
    %93 = vector.load %arg6[%c8_45, %c0_46] : memref<16x128xf32, #tpu.memory_space<vmem>>, vector<8x128xf32>
    tpu.vector_store %arg6[%c8_45, %c0_46], %92 {strides = array<i32>} : memref<16x128xf32, #tpu.memory_space<vmem>>, vector<8x128xf32>,
    return
  }
  func.func @transform_0(%arg0: i32) -> (i32, i32) {
    %c0_i32 = arith.constant 0 : i32
    %c0_i32_0 = arith.constant 0 : i32
    return %arg0, %c0_i32 : i32, i32
  }
  func.func @transform_1(%arg0: i32) -> (i32, i32) {
    %c0_i32 = arith.constant 0 : i32
    %c0_i32_0 = arith.constant 0 : i32
    %c0_i32_1 = arith.constant 0 : i32
    return %c0_i32, %c0_i32_0 : i32, i32
  }
  func.func @transform_2(%arg0: i32) -> (i32, i32) {
    %c0_i32 = arith.constant 0 : i32
    %c0_i32_0 = arith.constant 0 : i32
    %c0_i32_1 = arith.constant 0 : i32
    return %c0_i32, %c0_i32_0 : i32, i32
  }
  func.func @transform_3(%arg0: i32) -> (i32, i32) {
    %c0_i32 = arith.constant 0 : i32
    %c0_i32_0 = arith.constant 0 : i32
    %c0_i32_1 = arith.constant 0 : i32
    return %c0_i32, %c0_i32_0 : i32, i32
  }
  func.func @transform_4(%arg0: i32) -> (i32, i32) {
    %c0_i32 = arith.constant 0 : i32
    %c0_i32_0 = arith.constant 0 : i32
    %c0_i32_1 = arith.constant 0 : i32
    return %c0_i32, %c0_i32_0 : i32, i32
  }
  func.func @transform_5(%arg0: i32) -> (i32, i32) {
    %c0_i32 = arith.constant 0 : i32
    %c0_i32_0 = arith.constant 0 : i32
    return %arg0, %c0_i32 : i32, i32
  }
}

</mosaic_0001>

<llo_original>
// kernel: tpu_custom_call.1
$region0: #{tpu_custom_call.1}
  #allocation0 [shape = 'u32[]', space=smem, size = 0x4, offset = 0x4, fixed_abs, tag = 'smem constant byte address 0x4 - core index']
  #allocation1 [shape = 'u32[144,128]{1,0:T(1,128)}', space=vmem, size = 0x12000, scoped, tag = 'internal scratch']
  %s0 = inlined_call_operand.hbm [shape: f32[16,128], index: 0, kind: input, shape index: {}]
  %s1 = inlined_call_operand.hbm [shape: f32[128,128], index: 1, kind: input, shape index: {}]
  %s2 = inlined_call_operand.vmem [shape: f32[1,128], index: 2, kind: input, shape index: {}]
  %s3 = inlined_call_operand.hbm [shape: f32[128,128], index: 3, kind: input, shape index: {}]
  %s4 = inlined_call_operand.vmem [shape: f32[1,128], index: 4, kind: input, shape index: {}]
  %s5 = inlined_call_operand.hbm [shape: f32[16,128], index: 5, kind: output, shape index: {}]
  %s6 = sld [smem:[#allocation0]]
  $region42: #{tpu_custom_call.1} parent=0
    _
  %s8 = ssub.s32 1, %s6
  %s9 = scalar_select 0, %s8, %s6
  $region1: #{tpu_custom_call.1} parent=0
    #allocation2 [shape = 'u8[8192]{0}', space=vmem, size = 0x2000, scoped, tag = 'input window, operand 0, single buffered']
    #allocation3 [shape = 's32[1]{0}', space=sflag, size = 0x4, scoped, tag = 'scoped memory for tpu_custom_call.1']
    #allocation4 [shape = 's32[1]{0}', space=sflag, size = 0x4, scoped, tag = 'scoped memory for tpu_custom_call.1']
    #allocation5 [shape = 'u8[65536]{0}', space=vmem, size = 0x10000, scoped, tag = 'input window, operand 1, single buffered']
    #allocation6 [shape = 's32[1]{0}', space=sflag, size = 0x4, scoped, tag = 'scoped memory for tpu_custom_call.1']
    #allocation7 [shape = 'u8[65536]{0}', space=vmem, size = 0x10000, scoped, tag = 'input window, operand 3, single buffered']
    #allocation8 [shape = 'u8[8192]{0}', space=vmem, size = 0x2000, scoped, tag = 'output window, operand 0, single buffered']
    %10 = vsyncpa [#allocation3], 0
    %11 = vsyncpa [#allocation6], 0
    %12 = vsyncpa [#allocation4], 0
    // Predicated region
    $region2: #{tpu_custom_call.1} parent=1 // pred_check
      _
    $region3: #{tpu_custom_call.1} parent=1 // pred_check_branch
      %14 = sbr.rel (0) target = $region5
    $region4: #{tpu_custom_call.1} parent=1 // pred_region
      %s16 = ssub.s32 256, 256
      %17 = vsyncadd [#allocation3], %s16
      %s18 = sshll.u32 [#allocation2], 4
      %s19 = int_to_ptr.vmem [resolvable:$true] %s18
      %24 = dma.hbm_to_vmem [thread:$0]  %s0, 256, %s19, [#allocation3], 128, 128, 8
    $region5: #{tpu_custom_call.1} parent=1 // pred_fallthru
      _
    // Predicated region
    $region6: #{tpu_custom_call.1} parent=1 // pred_check
      _
    $region7: #{tpu_custom_call.1} parent=1 // pred_check_branch
      %26 = sbr.rel (0) target = $region9
    $region8: #{tpu_custom_call.1} parent=1 // pred_region
      %s28 = ssub.s32 2048, 2048
      %29 = vsyncadd [#allocation6], %s28
      %s30 = sshll.u32 [#allocation5], 4
      %s31 = int_to_ptr.vmem [resolvable:$true] %s30
      %36 = dma.hbm_to_vmem [thread:$0]  %s1, 2048, %s31, [#allocation6], 128, 128, 8
    $region9: #{tpu_custom_call.1} parent=1 // pred_fallthru
      _
    // Predicated region
    $region10: #{tpu_custom_call.1} parent=1 // pred_check
      _
    $region11: #{tpu_custom_call.1} parent=1 // pred_check_branch
      %38 = sbr.rel (0) target = $region13
    $region12: #{tpu_custom_call.1} parent=1 // pred_region
      _
    $region13: #{tpu_custom_call.1} parent=1 // pred_fallthru
      _
    // Predicated region
    $region14: #{tpu_custom_call.1} parent=1 // pred_check
      _
    $region15: #{tpu_custom_call.1} parent=1 // pred_check_branch
      %40 = sbr.rel (0) target = $region17
    $region16: #{tpu_custom_call.1} parent=1 // pred_region
      %s42 = ssub.s32 2048, 2048
      %43 = vsyncadd [#allocation6], %s42
      %s44 = sshll.u32 [#allocation7], 4
      %s45 = int_to_ptr.vmem [resolvable:$true] %s44
      %50 = dma.hbm_to_vmem [thread:$0]  %s3, 2048, %s45, [#allocation6], 128, 128, 8
    $region17: #{tpu_custom_call.1} parent=1 // pred_fallthru
      _
    // Predicated region
    $region18: #{tpu_custom_call.1} parent=1 // pred_check
      _
    $region19: #{tpu_custom_call.1} parent=1 // pred_check_branch
      %52 = sbr.rel (0) target = $region21
    $region20: #{tpu_custom_call.1} parent=1 // pred_region
      _
    $region21: #{tpu_custom_call.1} parent=1 // pred_fallthru
      _
    // Predicated region
    $region22: #{tpu_custom_call.1} parent=1 // pred_check
      _
    $region23: #{tpu_custom_call.1} parent=1 // pred_check_branch
      %54 = sbr.rel (0) target = $region25
    $region24: #{tpu_custom_call.1} parent=1 // pred_region
      %55 = dma.done [#allocation3], 256
    $region25: #{tpu_custom_call.1} parent=1 // pred_fallthru
      _
    // Predicated region
    $region26: #{tpu_custom_call.1} parent=1 // pred_check
      _
    $region27: #{tpu_custom_call.1} parent=1 // pred_check_branch
      %57 = sbr.rel (0) target = $region29
    $region28: #{tpu_custom_call.1} parent=1 // pred_region
      %58 = dma.done [#allocation6], 2048
    $region29: #{tpu_custom_call.1} parent=1 // pred_fallthru
      _
    // Predicated region
    $region30: #{tpu_custom_call.1} parent=1 // pred_check
      _
    $region31: #{tpu_custom_call.1} parent=1 // pred_check_branch
      %60 = sbr.rel (0) target = $region33
    $region32: #{tpu_custom_call.1} parent=1 // pred_region
      %61 = dma.done [#allocation6], 2048
    $region33: #{tpu_custom_call.1} parent=1 // pred_fallthru
      _
    %v62 = vld [vmem:[#allocation5] sm:$0xff]
    %v63 = vld [vmem:[#allocation5 + $0x8] sm:$0xff]
    %v64 = vld [vmem:[#allocation5 + $0x10] sm:$0xff]
    %v65 = vld [vmem:[#allocation5 + $0x18] sm:$0xff]
    %v66 = vld [vmem:[#allocation5 + $0x20] sm:$0xff]
    %v67 = vld [vmem:[#allocation5 + $0x28] sm:$0xff]
    %v68 = vld [vmem:[#allocation5 + $0x30] sm:$0xff]
    %v69 = vld [vmem:[#allocation5 + $0x38] sm:$0xff]
    %v70 = vld [vmem:[#allocation5 + $0x40] sm:$0xff]
    %v71 = vld [vmem:[#allocation5 + $0x48] sm:$0xff]
    %v72 = vld [vmem:[#allocation5 + $0x50] sm:$0xff]
    %v73 = vld [vmem:[#allocation5 + $0x58] sm:$0xff]
    %v74 = vld [vmem:[#allocation5 + $0x60] sm:$0xff]
    %v75 = vld [vmem:[#allocation5 + $0x68] sm:$0xff]
    %v76 = vld [vmem:[#allocation5 + $0x70] sm:$0xff]
    %v77 = vld [vmem:[#allocation5 + $0x78] sm:$0xff]
    %v78 = vld [vmem:[#allocation7] sm:$0xff]
    %v79 = vld [vmem:[#allocation7 + $0x8] sm:$0xff]
    %v80 = vld [vmem:[#allocation7 + $0x10] sm:$0xff]
    %v81 = vld [vmem:[#allocation7 + $0x18] sm:$0xff]
    %v82 = vld [vmem:[#allocation7 + $0x20] sm:$0xff]
    %v83 = vld [vmem:[#allocation7 + $0x28] sm:$0xff]
    %v84 = vld [vmem:[#allocation7 + $0x30] sm:$0xff]
    %v85 = vld [vmem:[#allocation7 + $0x38] sm:$0xff]
    %v86 = vld [vmem:[#allocation7 + $0x40] sm:$0xff]
    %v87 = vld [vmem:[#allocation7 + $0x48] sm:$0xff]
    %v88 = vld [vmem:[#allocation7 + $0x50] sm:$0xff]
    %v89 = vld [vmem:[#allocation7 + $0x58] sm:$0xff]
    %v90 = vld [vmem:[#allocation7 + $0x60] sm:$0xff]
    %v91 = vld [vmem:[#allocation7 + $0x68] sm:$0xff]
    %v92 = vld [vmem:[#allocation7 + $0x70] sm:$0xff]
    %v93 = vld [vmem:[#allocation7 + $0x78] sm:$0xff]
    %v94 = vld [vmem:[%s2] sm:$0x1]
    %v96 = vlaneseq
    %v97 = vshrl.u32 %v96, 7
    %v98 = vsub.s32 0, %v97
    %v99 = vrot.slane %v94, %v98
    %v101 = vld [vmem:[%s4] sm:$0x1]
    %v103 = vlaneseq
    %v104 = vshrl.u32 %v103, 7
    %v105 = vsub.s32 0, %v104
    %v106 = vrot.slane %v101, %v105
    %v108 = vld [vmem:[#allocation2] sm:$0xff]
    %109 = vmatprep.subr.mxu0 0.0
    %110 = vmatpush1.msra.mxu0 %v77
    %111 = vmatprep.subr.mxu0 0.0
    %112 = vmatpush1.msra.mxu0 %v76
    %113 = vmatprep.subr.mxu0 0.0
    %114 = vmatpush1.msra.mxu0 %v75
    %115 = vmatprep.subr.mxu0 0.0
    %116 = vmatpush1.msra.mxu0 %v74
    %117 = vmatprep.subr.mxu0 0.0
    %118 = vmatpush1.msra.mxu0 %v73
    %119 = vmatprep.subr.mxu0 0.0
    %120 = vmatpush1.msra.mxu0 %v72
    %121 = vmatprep.subr.mxu0 0.0
    %122 = vmatpush1.msra.mxu0 %v71
    %123 = vmatprep.subr.mxu0 0.0
    %124 = vmatpush1.msra.mxu0 %v70
    %125 = vmatprep.subr.mxu0 0.0
    %126 = vmatpush1.msra.mxu0 %v69
    %127 = vmatprep.subr.mxu0 0.0
    %128 = vmatpush1.msra.mxu0 %v68
    %129 = vmatprep.subr.mxu0 0.0
    %130 = vmatpush1.msra.mxu0 %v67
    %131 = vmatprep.subr.mxu0 0.0
    %132 = vmatpush1.msra.mxu0 %v66
    %133 = vmatprep.subr.mxu0 0.0
    %134 = vmatpush1.msra.mxu0 %v65
    %135 = vmatprep.subr.mxu0 0.0
    %136 = vmatpush1.msra.mxu0 %v64
    %137 = vmatprep.subr.mxu0 0.0
    %138 = vmatpush1.msra.mxu0 %v63
    %139 = vmatprep.subr.mxu0 0.0
    %140 = vmatpush1.msra.mxu0 %v62
    %141 = vmatprep.subr.mxu0 0.0
    %142 = vmatpush2.msra.mxu0 0.0
    %143 = vmatprep.subr.mxu0 0.0
    %144 = vmatpush2.msra.mxu0 0.0
    %145 = vmatprep.subr.mxu0 0.0
    %146 = vmatpush2.msra.mxu0 0.0
    %147 = vmatprep.subr.mxu0 0.0
    %148 = vmatpush2.msra.mxu0 0.0
    %149 = vmatprep.subr.mxu0 0.0
    %150 = vmatpush2.msra.mxu0 0.0
    %151 = vmatprep.subr.mxu0 0.0
    %152 = vmatpush2.msra.mxu0 0.0
    %153 = vmatprep.subr.mxu0 0.0
    %154 = vmatpush2.msra.mxu0 0.0
    %155 = vmatprep.subr.mxu0 0.0
    %156 = vmatpush2.msra.mxu0 0.0
    %157 = vmatprep.subr.mxu0 0.0
    %158 = vmatpush2.msra.mxu0 0.0
    %159 = vmatprep.subr.mxu0 0.0
    %160 = vmatpush2.msra.mxu0 0.0
    %161 = vmatprep.subr.mxu0 0.0
    %162 = vmatpush2.msra.mxu0 0.0
    %163 = vmatprep.subr.mxu0 0.0
    %164 = vmatpush2.msra.mxu0 0.0
    %165 = vmatprep.subr.mxu0 0.0
    %166 = vmatpush2.msra.mxu0 0.0
    %167 = vmatprep.subr.mxu0 0.0
    %168 = vmatpush2.msra.mxu0 0.0
    %169 = vmatprep.subr.mxu0 0.0
    %170 = vmatpush2.msra.mxu0 0.0
    %171 = vmatprep.subr.mxu0 0.0
    %172 = vmatpush2.msra.mxu0 0.0
    %173 = vmatprep.mubr.f32.mxu0 0.0
    %174 = vmatmul.mubr.f32.gmra.mxu0 %v108
    %v175 = vpop.f32.mrf.mxu0
    %v176 = vadd.f32 %v99, %v175
    %v177 = vpop.f32.mrf.mxu0
    %178 = vdwg.mxu0
    %v179 = vmax.f32 %v176, 0.0
    %v180 = vld [vmem:[#allocation2 + $0x8] sm:$0xff]
    %181 = vmatprep.subr.mxu0 0.0
    %182 = vmatpush1.msra.mxu0 %v77
    %183 = vmatprep.subr.mxu0 0.0
    %184 = vmatpush1.msra.mxu0 %v76
    %185 = vmatprep.subr.mxu0 0.0
    %186 = vmatpush1.msra.mxu0 %v75
    %187 = vmatprep.subr.mxu0 0.0
    %188 = vmatpush1.msra.mxu0 %v74
    %189 = vmatprep.subr.mxu0 0.0
    %190 = vmatpush1.msra.mxu0 %v73
    %191 = vmatprep.subr.mxu0 0.0
    %192 = vmatpush1.msra.mxu0 %v72
    %193 = vmatprep.subr.mxu0 0.0
    %194 = vmatpush1.msra.mxu0 %v71
    %195 = vmatprep.subr.mxu0 0.0
    %196 = vmatpush1.msra.mxu0 %v70
    %197 = vmatprep.subr.mxu0 0.0
    %198 = vmatpush1.msra.mxu0 %v69
    %199 = vmatprep.subr.mxu0 0.0
    %200 = vmatpush1.msra.mxu0 %v68
    %201 = vmatprep.subr.mxu0 0.0
    %202 = vmatpush1.msra.mxu0 %v67
    %203 = vmatprep.subr.mxu0 0.0
    %204 = vmatpush1.msra.mxu0 %v66
    %205 = vmatprep.subr.mxu0 0.0
    %206 = vmatpush1.msra.mxu0 %v65
    %207 = vmatprep.subr.mxu0 0.0
    %208 = vmatpush1.msra.mxu0 %v64
    %209 = vmatprep.subr.mxu0 0.0
    %210 = vmatpush1.msra.mxu0 %v63
    %211 = vmatprep.subr.mxu0 0.0
    %212 = vmatpush1.msra.mxu0 %v62
    %213 = vmatprep.subr.mxu0 0.0
    %214 = vmatpush2.msra.mxu0 0.0
    %215 = vmatprep.subr.mxu0 0.0
    %216 = vmatpush2.msra.mxu0 0.0
    %217 = vmatprep.subr.mxu0 0.0
    %218 = vmatpush2.msra.mxu0 0.0
    %219 = vmatprep.subr.mxu0 0.0
    %220 = vmatpush2.msra.mxu0 0.0
    %221 = vmatprep.subr.mxu0 0.0
    %222 = vmatpush2.msra.mxu0 0.0
    %223 = vmatprep.subr.mxu0 0.0
    %224 = vmatpush2.msra.mxu0 0.0
    %225 = vmatprep.subr.mxu0 0.0
    %226 = vmatpush2.msra.mxu0 0.0
    %227 = vmatprep.subr.mxu0 0.0
    %228 = vmatpush2.msra.mxu0 0.0
    %229 = vmatprep.subr.mxu0 0.0
    %230 = vmatpush2.msra.mxu0 0.0
    %231 = vmatprep.subr.mxu0 0.0
    %232 = vmatpush2.msra.mxu0 0.0
    %233 = vmatprep.subr.mxu0 0.0
    %234 = vmatpush2.msra.mxu0 0.0
    %235 = vmatprep.subr.mxu0 0.0
    %236 = vmatpush2.msra.mxu0 0.0
    %237 = vmatprep.subr.mxu0 0.0
    %238 = vmatpush2.msra.mxu0 0.0
    %239 = vmatprep.subr.mxu0 0.0
    %240 = vmatpush2.msra.mxu0 0.0
    %241 = vmatprep.subr.mxu0 0.0
    %242 = vmatpush2.msra.mxu0 0.0
    %243 = vmatprep.subr.mxu0 0.0
    %244 = vmatpush2.msra.mxu0 0.0
    %245 = vmatprep.mubr.f32.mxu0 0.0
    %246 = vmatmul.mubr.f32.gmra.mxu0 %v180
    %v247 = vpop.f32.mrf.mxu0
    %v248 = vadd.f32 %v99, %v247
    %v249 = vpop.f32.mrf.mxu0
    %250 = vdwg.mxu0
    %v251 = vmax.f32 %v248, 0.0
    %252 = vmatprep.subr.mxu0 0.0
    %253 = vmatpush1.msra.mxu0 %v93
    %254 = vmatprep.subr.mxu0 0.0
    %255 = vmatpush1.msra.mxu0 %v92
    %256 = vmatprep.subr.mxu0 0.0
    %257 = vmatpush1.msra.mxu0 %v91
    %258 = vmatprep.subr.mxu0 0.0
    %259 = vmatpush1.msra.mxu0 %v90
    %260 = vmatprep.subr.mxu0 0.0
    %261 = vmatpush1.msra.mxu0 %v89
    %262 = vmatprep.subr.mxu0 0.0
    %263 = vmatpush1.msra.mxu0 %v88
    %264 = vmatprep.subr.mxu0 0.0
    %265 = vmatpush1.msra.mxu0 %v87
    %266 = vmatprep.subr.mxu0 0.0
    %267 = vmatpush1.msra.mxu0 %v86
    %268 = vmatprep.subr.mxu0 0.0
    %269 = vmatpush1.msra.mxu0 %v85
    %270 = vmatprep.subr.mxu0 0.0
    %271 = vmatpush1.msra.mxu0 %v84
    %272 = vmatprep.subr.mxu0 0.0
    %273 = vmatpush1.msra.mxu0 %v83
    %274 = vmatprep.subr.mxu0 0.0
    %275 = vmatpush1.msra.mxu0 %v82
    %276 = vmatprep.subr.mxu0 0.0
    %277 = vmatpush1.msra.mxu0 %v81
    %278 = vmatprep.subr.mxu0 0.0
    %279 = vmatpush1.msra.mxu0 %v80
    %280 = vmatprep.subr.mxu0 0.0
    %281 = vmatpush1.msra.mxu0 %v79
    %282 = vmatprep.subr.mxu0 0.0
    %283 = vmatpush1.msra.mxu0 %v78
    %284 = vmatprep.subr.mxu0 0.0
    %285 = vmatpush2.msra.mxu0 0.0
    %286 = vmatprep.subr.mxu0 0.0
    %287 = vmatpush2.msra.mxu0 0.0
    %288 = vmatprep.subr.mxu0 0.0
    %289 = vmatpush2.msra.mxu0 0.0
    %290 = vmatprep.subr.mxu0 0.0
    %291 = vmatpush2.msra.mxu0 0.0
    %292 = vmatprep.subr.mxu0 0.0
    %293 = vmatpush2.msra.mxu0 0.0
    %294 = vmatprep.subr.mxu0 0.0
    %295 = vmatpush2.msra.mxu0 0.0
    %296 = vmatprep.subr.mxu0 0.0
    %297 = vmatpush2.msra.mxu0 0.0
    %298 = vmatprep.subr.mxu0 0.0
    %299 = vmatpush2.msra.mxu0 0.0
    %300 = vmatprep.subr.mxu0 0.0
    %301 = vmatpush2.msra.mxu0 0.0
    %302 = vmatprep.subr.mxu0 0.0
    %303 = vmatpush2.msra.mxu0 0.0
    %304 = vmatprep.subr.mxu0 0.0
    %305 = vmatpush2.msra.mxu0 0.0
    %306 = vmatprep.subr.mxu0 0.0
    %307 = vmatpush2.msra.mxu0 0.0
    %308 = vmatprep.subr.mxu0 0.0
    %309 = vmatpush2.msra.mxu0 0.0
    %310 = vmatprep.subr.mxu0 0.0
    %311 = vmatpush2.msra.mxu0 0.0
    %312 = vmatprep.subr.mxu0 0.0
    %313 = vmatpush2.msra.mxu0 0.0
    %314 = vmatprep.subr.mxu0 0.0
    %315 = vmatpush2.msra.mxu0 0.0
    %316 = vmatprep.mubr.f32.mxu0 0.0
    %317 = vmatmul.mubr.f32.gmra.mxu0 %v179
    %v318 = vpop.f32.mrf.mxu0
    %v319 = vadd.f32 %v106, %v318
    %v320 = vpop.f32.mrf.mxu0
    %321 = vdwg.mxu0
    %v322 = vmax.f32 %v319, 0.0
    %v323 = vadd.f32 %v179, %v322
    %324 = vmatprep.subr.mxu0 0.0
    %325 = vmatpush1.msra.mxu0 %v93
    %326 = vmatprep.subr.mxu0 0.0
    %327 = vmatpush1.msra.mxu0 %v92
    %328 = vmatprep.subr.mxu0 0.0
    %329 = vmatpush1.msra.mxu0 %v91
    %330 = vmatprep.subr.mxu0 0.0
    %331 = vmatpush1.msra.mxu0 %v90
    %332 = vmatprep.subr.mxu0 0.0
    %333 = vmatpush1.msra.mxu0 %v89
    %334 = vmatprep.subr.mxu0 0.0
    %335 = vmatpush1.msra.mxu0 %v88
    %336 = vmatprep.subr.mxu0 0.0
    %337 = vmatpush1.msra.mxu0 %v87
    %338 = vmatprep.subr.mxu0 0.0
    %339 = vmatpush1.msra.mxu0 %v86
    %340 = vmatprep.subr.mxu0 0.0
    %341 = vmatpush1.msra.mxu0 %v85
    %342 = vmatprep.subr.mxu0 0.0
    %343 = vmatpush1.msra.mxu0 %v84
    %344 = vmatprep.subr.mxu0 0.0
    %345 = vmatpush1.msra.mxu0 %v83
    %346 = vmatprep.subr.mxu0 0.0
    %347 = vmatpush1.msra.mxu0 %v82
    %348 = vmatprep.subr.mxu0 0.0
    %349 = vmatpush1.msra.mxu0 %v81
    %350 = vmatprep.subr.mxu0 0.0
    %351 = vmatpush1.msra.mxu0 %v80
    %352 = vmatprep.subr.mxu0 0.0
    %353 = vmatpush1.msra.mxu0 %v79
    %354 = vmatprep.subr.mxu0 0.0
    %355 = vmatpush1.msra.mxu0 %v78
    %356 = vmatprep.subr.mxu0 0.0
    %357 = vmatpush2.msra.mxu0 0.0
    %358 = vmatprep.subr.mxu0 0.0
    %359 = vmatpush2.msra.mxu0 0.0
    %360 = vmatprep.subr.mxu0 0.0
    %361 = vmatpush2.msra.mxu0 0.0
    %362 = vmatprep.subr.mxu0 0.0
    %363 = vmatpush2.msra.mxu0 0.0
    %364 = vmatprep.subr.mxu0 0.0
    %365 = vmatpush2.msra.mxu0 0.0
    %366 = vmatprep.subr.mxu0 0.0
    %367 = vmatpush2.msra.mxu0 0.0
    %368 = vmatprep.subr.mxu0 0.0
    %369 = vmatpush2.msra.mxu0 0.0
    %370 = vmatprep.subr.mxu0 0.0
    %371 = vmatpush2.msra.mxu0 0.0
    %372 = vmatprep.subr.mxu0 0.0
    %373 = vmatpush2.msra.mxu0 0.0
    %374 = vmatprep.subr.mxu0 0.0
    %375 = vmatpush2.msra.mxu0 0.0
    %376 = vmatprep.subr.mxu0 0.0
    %377 = vmatpush2.msra.mxu0 0.0
    %378 = vmatprep.subr.mxu0 0.0
    %379 = vmatpush2.msra.mxu0 0.0
    %380 = vmatprep.subr.mxu0 0.0
    %381 = vmatpush2.msra.mxu0 0.0
    %382 = vmatprep.subr.mxu0 0.0
    %383 = vmatpush2.msra.mxu0 0.0
    %384 = vmatprep.subr.mxu0 0.0
    %385 = vmatpush2.msra.mxu0 0.0
    %386 = vmatprep.subr.mxu0 0.0
    %387 = vmatpush2.msra.mxu0 0.0
    %388 = vmatprep.mubr.f32.mxu0 0.0
    %389 = vmatmul.mubr.f32.gmra.mxu0 %v251
    %v390 = vpop.f32.mrf.mxu0
    %v391 = vadd.f32 %v106, %v390
    %v392 = vpop.f32.mrf.mxu0
    %393 = vdwg.mxu0
    %v394 = vmax.f32 %v391, 0.0
    %v395 = vadd.f32 %v251, %v394
    %396 = vmatprep.subr.mxu0 0.0
    %397 = vmatpush1.msra.mxu0 %v93
    %398 = vmatprep.subr.mxu0 0.0
    %399 = vmatpush1.msra.mxu0 %v92
    %400 = vmatprep.subr.mxu0 0.0
    %401 = vmatpush1.msra.mxu0 %v91
    %402 = vmatprep.subr.mxu0 0.0
    %403 = vmatpush1.msra.mxu0 %v90
    %404 = vmatprep.subr.mxu0 0.0
    %405 = vmatpush1.msra.mxu0 %v89
    %406 = vmatprep.subr.mxu0 0.0
    %407 = vmatpush1.msra.mxu0 %v88
    %408 = vmatprep.subr.mxu0 0.0
    %409 = vmatpush1.msra.mxu0 %v87
    %410 = vmatprep.subr.mxu0 0.0
    %411 = vmatpush1.msra.mxu0 %v86
    %412 = vmatprep.subr.mxu0 0.0
    %413 = vmatpush1.msra.mxu0 %v85
    %414 = vmatprep.subr.mxu0 0.0
    %415 = vmatpush1.msra.mxu0 %v84
    %416 = vmatprep.subr.mxu0 0.0
    %417 = vmatpush1.msra.mxu0 %v83
    %418 = vmatprep.subr.mxu0 0.0
    %419 = vmatpush1.msra.mxu0 %v82
    %420 = vmatprep.subr.mxu0 0.0
    %421 = vmatpush1.msra.mxu0 %v81
    %422 = vmatprep.subr.mxu0 0.0
    %423 = vmatpush1.msra.mxu0 %v80
    %424 = vmatprep.subr.mxu0 0.0
    %425 = vmatpush1.msra.mxu0 %v79
    %426 = vmatprep.subr.mxu0 0.0
    %427 = vmatpush1.msra.mxu0 %v78
    %428 = vmatprep.subr.mxu0 0.0
    %429 = vmatpush2.msra.mxu0 0.0
    %430 = vmatprep.subr.mxu0 0.0
    %431 = vmatpush2.msra.mxu0 0.0
    %432 = vmatprep.subr.mxu0 0.0
    %433 = vmatpush2.msra.mxu0 0.0
    %434 = vmatprep.subr.mxu0 0.0
    %435 = vmatpush2.msra.mxu0 0.0
    %436 = vmatprep.subr.mxu0 0.0
    %437 = vmatpush2.msra.mxu0 0.0
    %438 = vmatprep.subr.mxu0 0.0
    %439 = vmatpush2.msra.mxu0 0.0
    %440 = vmatprep.subr.mxu0 0.0
    %441 = vmatpush2.msra.mxu0 0.0
    %442 = vmatprep.subr.mxu0 0.0
    %443 = vmatpush2.msra.mxu0 0.0
    %444 = vmatprep.subr.mxu0 0.0
    %445 = vmatpush2.msra.mxu0 0.0
    %446 = vmatprep.subr.mxu0 0.0
    %447 = vmatpush2.msra.mxu0 0.0
    %448 = vmatprep.subr.mxu0 0.0
    %449 = vmatpush2.msra.mxu0 0.0
    %450 = vmatprep.subr.mxu0 0.0
    %451 = vmatpush2.msra.mxu0 0.0
    %452 = vmatprep.subr.mxu0 0.0
    %453 = vmatpush2.msra.mxu0 0.0
    %454 = vmatprep.subr.mxu0 0.0
    %455 = vmatpush2.msra.mxu0 0.0
    %456 = vmatprep.subr.mxu0 0.0
    %457 = vmatpush2.msra.mxu0 0.0
    %458 = vmatprep.subr.mxu0 0.0
    %459 = vmatpush2.msra.mxu0 0.0
    %460 = vmatprep.mubr.f32.mxu0 0.0
    %461 = vmatmul.mubr.f32.gmra.mxu0 %v322
    %v462 = vpop.f32.mrf.mxu0
    %v463 = vadd.f32 %v106, %v462
    %v464 = vpop.f32.mrf.mxu0
    %465 = vdwg.mxu0
    %v466 = vmax.f32 %v463, 0.0
    %v467 = vadd.f32 %v323, %v466
    %468 = vmatprep.subr.mxu0 0.0
    %469 = vmatpush1.msra.mxu0 %v93
    %470 = vmatprep.subr.mxu0 0.0
    %471 = vmatpush1.msra.mxu0 %v92
    %472 = vmatprep.subr.mxu0 0.0
    %473 = vmatpush1.msra.mxu0 %v91
    %474 = vmatprep.subr.mxu0 0.0
    %475 = vmatpush1.msra.mxu0 %v90
    %476 = vmatprep.subr.mxu0 0.0
    %477 = vmatpush1.msra.mxu0 %v89
    %478 = vmatprep.subr.mxu0 0.0
    %479 = vmatpush1.msra.mxu0 %v88
    %480 = vmatprep.subr.mxu0 0.0
    %481 = vmatpush1.msra.mxu0 %v87
    %482 = vmatprep.subr.mxu0 0.0
    %483 = vmatpush1.msra.mxu0 %v86
    %484 = vmatprep.subr.mxu0 0.0
    %485 = vmatpush1.msra.mxu0 %v85
    %486 = vmatprep.subr.mxu0 0.0
    %487 = vmatpush1.msra.mxu0 %v84
    %488 = vmatprep.subr.mxu0 0.0
    %489 = vmatpush1.msra.mxu0 %v83
    %490 = vmatprep.subr.mxu0 0.0
    %491 = vmatpush1.msra.mxu0 %v82
    %492 = vmatprep.subr.mxu0 0.0
    %493 = vmatpush1.msra.mxu0 %v81
    %494 = vmatprep.subr.mxu0 0.0
    %495 = vmatpush1.msra.mxu0 %v80
    %496 = vmatprep.subr.mxu0 0.0
    %497 = vmatpush1.msra.mxu0 %v79
    %498 = vmatprep.subr.mxu0 0.0
    %499 = vmatpush1.msra.mxu0 %v78
    %500 = vmatprep.subr.mxu0 0.0
    %501 = vmatpush2.msra.mxu0 0.0
    %502 = vmatprep.subr.mxu0 0.0
    %503 = vmatpush2.msra.mxu0 0.0
    %504 = vmatprep.subr.mxu0 0.0
    %505 = vmatpush2.msra.mxu0 0.0
    %506 = vmatprep.subr.mxu0 0.0
    %507 = vmatpush2.msra.mxu0 0.0
    %508 = vmatprep.subr.mxu0 0.0
    %509 = vmatpush2.msra.mxu0 0.0
    %510 = vmatprep.subr.mxu0 0.0
    %511 = vmatpush2.msra.mxu0 0.0
    %512 = vmatprep.subr.mxu0 0.0
    %513 = vmatpush2.msra.mxu0 0.0
    %514 = vmatprep.subr.mxu0 0.0
    %515 = vmatpush2.msra.mxu0 0.0
    %516 = vmatprep.subr.mxu0 0.0
    %517 = vmatpush2.msra.mxu0 0.0
    %518 = vmatprep.subr.mxu0 0.0
    %519 = vmatpush2.msra.mxu0 0.0
    %520 = vmatprep.subr.mxu0 0.0
    %521 = vmatpush2.msra.mxu0 0.0
    %522 = vmatprep.subr.mxu0 0.0
    %523 = vmatpush2.msra.mxu0 0.0
    %524 = vmatprep.subr.mxu0 0.0
    %525 = vmatpush2.msra.mxu0 0.0
    %526 = vmatprep.subr.mxu0 0.0
    %527 = vmatpush2.msra.mxu0 0.0
    %528 = vmatprep.subr.mxu0 0.0
    %529 = vmatpush2.msra.mxu0 0.0
    %530 = vmatprep.subr.mxu0 0.0
    %531 = vmatpush2.msra.mxu0 0.0
    %532 = vmatprep.mubr.f32.mxu0 0.0
    %533 = vmatmul.mubr.f32.gmra.mxu0 %v394
    %v534 = vpop.f32.mrf.mxu0
    %v535 = vadd.f32 %v106, %v534
    %v536 = vpop.f32.mrf.mxu0
    %537 = vdwg.mxu0
    %v538 = vmax.f32 %v535, 0.0
    %v539 = vadd.f32 %v395, %v538
    %540 = vmatprep.subr.mxu0 0.0
    %541 = vmatpush1.msra.mxu0 %v93
    %542 = vmatprep.subr.mxu0 0.0
    %543 = vmatpush1.msra.mxu0 %v92
    %544 = vmatprep.subr.mxu0 0.0
    %545 = vmatpush1.msra.mxu0 %v91
    %546 = vmatprep.subr.mxu0 0.0
    %547 = vmatpush1.msra.mxu0 %v90
    %548 = vmatprep.subr.mxu0 0.0
    %549 = vmatpush1.msra.mxu0 %v89
    %550 = vmatprep.subr.mxu0 0.0
    %551 = vmatpush1.msra.mxu0 %v88
    %552 = vmatprep.subr.mxu0 0.0
    %553 = vmatpush1.msra.mxu0 %v87
    %554 = vmatprep.subr.mxu0 0.0
    %555 = vmatpush1.msra.mxu0 %v86
    %556 = vmatprep.subr.mxu0 0.0
    %557 = vmatpush1.msra.mxu0 %v85
    %558 = vmatprep.subr.mxu0 0.0
    %559 = vmatpush1.msra.mxu0 %v84
    %560 = vmatprep.subr.mxu0 0.0
    %561 = vmatpush1.msra.mxu0 %v83
    %562 = vmatprep.subr.mxu0 0.0
    %563 = vmatpush1.msra.mxu0 %v82
    %564 = vmatprep.subr.mxu0 0.0
    %565 = vmatpush1.msra.mxu0 %v81
    %566 = vmatprep.subr.mxu0 0.0
    %567 = vmatpush1.msra.mxu0 %v80
    %568 = vmatprep.subr.mxu0 0.0
    %569 = vmatpush1.msra.mxu0 %v79
    %570 = vmatprep.subr.mxu0 0.0
    %571 = vmatpush1.msra.mxu0 %v78
    %572 = vmatprep.subr.mxu0 0.0
    %573 = vmatpush2.msra.mxu0 0.0
    %574 = vmatprep.subr.mxu0 0.0
    %575 = vmatpush2.msra.mxu0 0.0
    %576 = vmatprep.subr.mxu0 0.0
    %577 = vmatpush2.msra.mxu0 0.0
    %578 = vmatprep.subr.mxu0 0.0
    %579 = vmatpush2.msra.mxu0 0.0
    %580 = vmatprep.subr.mxu0 0.0
    %581 = vmatpush2.msra.mxu0 0.0
    %582 = vmatprep.subr.mxu0 0.0
    %583 = vmatpush2.msra.mxu0 0.0
    %584 = vmatprep.subr.mxu0 0.0
    %585 = vmatpush2.msra.mxu0 0.0
    %586 = vmatprep.subr.mxu0 0.0
    %587 = vmatpush2.msra.mxu0 0.0
    %588 = vmatprep.subr.mxu0 0.0
    %589 = vmatpush2.msra.mxu0 0.0
    %590 = vmatprep.subr.mxu0 0.0
    %591 = vmatpush2.msra.mxu0 0.0
    %592 = vmatprep.subr.mxu0 0.0
    %593 = vmatpush2.msra.mxu0 0.0
    %594 = vmatprep.subr.mxu0 0.0
    %595 = vmatpush2.msra.mxu0 0.0
    %596 = vmatprep.subr.mxu0 0.0
    %597 = vmatpush2.msra.mxu0 0.0
    %598 = vmatprep.subr.mxu0 0.0
    %599 = vmatpush2.msra.mxu0 0.0
    %600 = vmatprep.subr.mxu0 0.0
    %601 = vmatpush2.msra.mxu0 0.0
    %602 = vmatprep.subr.mxu0 0.0
    %603 = vmatpush2.msra.mxu0 0.0
    %604 = vmatprep.mubr.f32.mxu0 0.0
    %605 = vmatmul.mubr.f32.gmra.mxu0 %v466
    %v606 = vpop.f32.mrf.mxu0
    %v607 = vadd.f32 %v106, %v606
    %v608 = vpop.f32.mrf.mxu0
    %609 = vdwg.mxu0
    %v610 = vmax.f32 %v607, 0.0
    %v611 = vadd.f32 %v467, %v610
    %612 = vmatprep.subr.mxu0 0.0
    %613 = vmatpush1.msra.mxu0 %v93
    %614 = vmatprep.subr.mxu0 0.0
    %615 = vmatpush1.msra.mxu0 %v92
    %616 = vmatprep.subr.mxu0 0.0
    %617 = vmatpush1.msra.mxu0 %v91
    %618 = vmatprep.subr.mxu0 0.0
    %619 = vmatpush1.msra.mxu0 %v90
    %620 = vmatprep.subr.mxu0 0.0
    %621 = vmatpush1.msra.mxu0 %v89
    %622 = vmatprep.subr.mxu0 0.0
    %623 = vmatpush1.msra.mxu0 %v88
    %624 = vmatprep.subr.mxu0 0.0
    %625 = vmatpush1.msra.mxu0 %v87
    %626 = vmatprep.subr.mxu0 0.0
    %627 = vmatpush1.msra.mxu0 %v86
    %628 = vmatprep.subr.mxu0 0.0
    %629 = vmatpush1.msra.mxu0 %v85
    %630 = vmatprep.subr.mxu0 0.0
    %631 = vmatpush1.msra.mxu0 %v84
    %632 = vmatprep.subr.mxu0 0.0
    %633 = vmatpush1.msra.mxu0 %v83
    %634 = vmatprep.subr.mxu0 0.0
    %635 = vmatpush1.msra.mxu0 %v82
    %636 = vmatprep.subr.mxu0 0.0
    %637 = vmatpush1.msra.mxu0 %v81
    %638 = vmatprep.subr.mxu0 0.0
    %639 = vmatpush1.msra.mxu0 %v80
    %640 = vmatprep.subr.mxu0 0.0
    %641 = vmatpush1.msra.mxu0 %v79
    %642 = vmatprep.subr.mxu0 0.0
    %643 = vmatpush1.msra.mxu0 %v78
    %644 = vmatprep.subr.mxu0 0.0
    %645 = vmatpush2.msra.mxu0 0.0
    %646 = vmatprep.subr.mxu0 0.0
    %647 = vmatpush2.msra.mxu0 0.0
    %648 = vmatprep.subr.mxu0 0.0
    %649 = vmatpush2.msra.mxu0 0.0
    %650 = vmatprep.subr.mxu0 0.0
    %651 = vmatpush2.msra.mxu0 0.0
    %652 = vmatprep.subr.mxu0 0.0
    %653 = vmatpush2.msra.mxu0 0.0
    %654 = vmatprep.subr.mxu0 0.0
    %655 = vmatpush2.msra.mxu0 0.0
    %656 = vmatprep.subr.mxu0 0.0
    %657 = vmatpush2.msra.mxu0 0.0
    %658 = vmatprep.subr.mxu0 0.0
    %659 = vmatpush2.msra.mxu0 0.0
    %660 = vmatprep.subr.mxu0 0.0
    %661 = vmatpush2.msra.mxu0 0.0
    %662 = vmatprep.subr.mxu0 0.0
    %663 = vmatpush2.msra.mxu0 0.0
    %664 = vmatprep.subr.mxu0 0.0
    %665 = vmatpush2.msra.mxu0 0.0
    %666 = vmatprep.subr.mxu0 0.0
    %667 = vmatpush2.msra.mxu0 0.0
    %668 = vmatprep.subr.mxu0 0.0
    %669 = vmatpush2.msra.mxu0 0.0
    %670 = vmatprep.subr.mxu0 0.0
    %671 = vmatpush2.msra.mxu0 0.0
    %672 = vmatprep.subr.mxu0 0.0
    %673 = vmatpush2.msra.mxu0 0.0
    %674 = vmatprep.subr.mxu0 0.0
    %675 = vmatpush2.msra.mxu0 0.0
    %676 = vmatprep.mubr.f32.mxu0 0.0
    %677 = vmatmul.mubr.f32.gmra.mxu0 %v538
    %v678 = vpop.f32.mrf.mxu0
    %v679 = vadd.f32 %v106, %v678
    %v680 = vpop.f32.mrf.mxu0
    %681 = vdwg.mxu0
    %v682 = vmax.f32 %v679, 0.0
    %v683 = vadd.f32 %v539, %v682
    %684 = vmatprep.subr.mxu0 0.0
    %685 = vmatpush1.msra.mxu0 %v93
    %686 = vmatprep.subr.mxu0 0.0
    %687 = vmatpush1.msra.mxu0 %v92
    %688 = vmatprep.subr.mxu0 0.0
    %689 = vmatpush1.msra.mxu0 %v91
    %690 = vmatprep.subr.mxu0 0.0
    %691 = vmatpush1.msra.mxu0 %v90
    %692 = vmatprep.subr.mxu0 0.0
    %693 = vmatpush1.msra.mxu0 %v89
    %694 = vmatprep.subr.mxu0 0.0
    %695 = vmatpush1.msra.mxu0 %v88
    %696 = vmatprep.subr.mxu0 0.0
    %697 = vmatpush1.msra.mxu0 %v87
    %698 = vmatprep.subr.mxu0 0.0
    %699 = vmatpush1.msra.mxu0 %v86
    %700 = vmatprep.subr.mxu0 0.0
    %701 = vmatpush1.msra.mxu0 %v85
    %702 = vmatprep.subr.mxu0 0.0
    %703 = vmatpush1.msra.mxu0 %v84
    %704 = vmatprep.subr.mxu0 0.0
    %705 = vmatpush1.msra.mxu0 %v83
    %706 = vmatprep.subr.mxu0 0.0
    %707 = vmatpush1.msra.mxu0 %v82
    %708 = vmatprep.subr.mxu0 0.0
    %709 = vmatpush1.msra.mxu0 %v81
    %710 = vmatprep.subr.mxu0 0.0
    %711 = vmatpush1.msra.mxu0 %v80
    %712 = vmatprep.subr.mxu0 0.0
    %713 = vmatpush1.msra.mxu0 %v79
    %714 = vmatprep.subr.mxu0 0.0
    %715 = vmatpush1.msra.mxu0 %v78
    %716 = vmatprep.subr.mxu0 0.0
    %717 = vmatpush2.msra.mxu0 0.0
    %718 = vmatprep.subr.mxu0 0.0
    %719 = vmatpush2.msra.mxu0 0.0
    %720 = vmatprep.subr.mxu0 0.0
    %721 = vmatpush2.msra.mxu0 0.0
    %722 = vmatprep.subr.mxu0 0.0
    %723 = vmatpush2.msra.mxu0 0.0
    %724 = vmatprep.subr.mxu0 0.0
    %725 = vmatpush2.msra.mxu0 0.0
    %726 = vmatprep.subr.mxu0 0.0
    %727 = vmatpush2.msra.mxu0 0.0
    %728 = vmatprep.subr.mxu0 0.0
    %729 = vmatpush2.msra.mxu0 0.0
    %730 = vmatprep.subr.mxu0 0.0
    %731 = vmatpush2.msra.mxu0 0.0
    %732 = vmatprep.subr.mxu0 0.0
    %733 = vmatpush2.msra.mxu0 0.0
    %734 = vmatprep.subr.mxu0 0.0
    %735 = vmatpush2.msra.mxu0 0.0
    %736 = vmatprep.subr.mxu0 0.0
    %737 = vmatpush2.msra.mxu0 0.0
    %738 = vmatprep.subr.mxu0 0.0
    %739 = vmatpush2.msra.mxu0 0.0
    %740 = vmatprep.subr.mxu0 0.0
    %741 = vmatpush2.msra.mxu0 0.0
    %742 = vmatprep.subr.mxu0 0.0
    %743 = vmatpush2.msra.mxu0 0.0
    %744 = vmatprep.subr.mxu0 0.0
    %745 = vmatpush2.msra.mxu0 0.0
    %746 = vmatprep.subr.mxu0 0.0
    %747 = vmatpush2.msra.mxu0 0.0
    %748 = vmatprep.mubr.f32.mxu0 0.0
    %749 = vmatmul.mubr.f32.gmra.mxu0 %v610
    %v750 = vpop.f32.mrf.mxu0
    %v751 = vadd.f32 %v106, %v750
    %v752 = vpop.f32.mrf.mxu0
    %753 = vdwg.mxu0
    %v754 = vmax.f32 %v751, 0.0
    %v755 = vadd.f32 %v611, %v754
    %756 = vmatprep.subr.mxu0 0.0
    %757 = vmatpush1.msra.mxu0 %v93
    %758 = vmatprep.subr.mxu0 0.0
    %759 = vmatpush1.msra.mxu0 %v92
    %760 = vmatprep.subr.mxu0 0.0
    %761 = vmatpush1.msra.mxu0 %v91
    %762 = vmatprep.subr.mxu0 0.0
    %763 = vmatpush1.msra.mxu0 %v90
    %764 = vmatprep.subr.mxu0 0.0
    %765 = vmatpush1.msra.mxu0 %v89
    %766 = vmatprep.subr.mxu0 0.0
    %767 = vmatpush1.msra.mxu0 %v88
    %768 = vmatprep.subr.mxu0 0.0
    %769 = vmatpush1.msra.mxu0 %v87
    %770 = vmatprep.subr.mxu0 0.0
    %771 = vmatpush1.msra.mxu0 %v86
    %772 = vmatprep.subr.mxu0 0.0
    %773 = vmatpush1.msra.mxu0 %v85
    %774 = vmatprep.subr.mxu0 0.0
    %775 = vmatpush1.msra.mxu0 %v84
    %776 = vmatprep.subr.mxu0 0.0
    %777 = vmatpush1.msra.mxu0 %v83
    %778 = vmatprep.subr.mxu0 0.0
    %779 = vmatpush1.msra.mxu0 %v82
    %780 = vmatprep.subr.mxu0 0.0
    %781 = vmatpush1.msra.mxu0 %v81
    %782 = vmatprep.subr.mxu0 0.0
    %783 = vmatpush1.msra.mxu0 %v80
    %784 = vmatprep.subr.mxu0 0.0
    %785 = vmatpush1.msra.mxu0 %v79
    %786 = vmatprep.subr.mxu0 0.0
    %787 = vmatpush1.msra.mxu0 %v78
    %788 = vmatprep.subr.mxu0 0.0
    %789 = vmatpush2.msra.mxu0 0.0
    %790 = vmatprep.subr.mxu0 0.0
    %791 = vmatpush2.msra.mxu0 0.0
    %792 = vmatprep.subr.mxu0 0.0
    %793 = vmatpush2.msra.mxu0 0.0
    %794 = vmatprep.subr.mxu0 0.0
    %795 = vmatpush2.msra.mxu0 0.0
    %796 = vmatprep.subr.mxu0 0.0
    %797 = vmatpush2.msra.mxu0 0.0
    %798 = vmatprep.subr.mxu0 0.0
    %799 = vmatpush2.msra.mxu0 0.0
    %800 = vmatprep.subr.mxu0 0.0
    %801 = vmatpush2.msra.mxu0 0.0
    %802 = vmatprep.subr.mxu0 0.0
    %803 = vmatpush2.msra.mxu0 0.0
    %804 = vmatprep.subr.mxu0 0.0
    %805 = vmatpush2.msra.mxu0 0.0
    %806 = vmatprep.subr.mxu0 0.0
    %807 = vmatpush2.msra.mxu0 0.0
    %808 = vmatprep.subr.mxu0 0.0
    %809 = vmatpush2.msra.mxu0 0.0
    %810 = vmatprep.subr.mxu0 0.0
    %811 = vmatpush2.msra.mxu0 0.0
    %812 = vmatprep.subr.mxu0 0.0
    %813 = vmatpush2.msra.mxu0 0.0
    %814 = vmatprep.subr.mxu0 0.0
    %815 = vmatpush2.msra.mxu0 0.0
    %816 = vmatprep.subr.mxu0 0.0
    %817 = vmatpush2.msra.mxu0 0.0
    %818 = vmatprep.subr.mxu0 0.0
    %819 = vmatpush2.msra.mxu0 0.0
    %820 = vmatprep.mubr.f32.mxu0 0.0
    %821 = vmatmul.mubr.f32.gmra.mxu0 %v682
    %v822 = vpop.f32.mrf.mxu0
    %v823 = vadd.f32 %v106, %v822
    %v824 = vpop.f32.mrf.mxu0
    %825 = vdwg.mxu0
    %v826 = vmax.f32 %v823, 0.0
    %v827 = vadd.f32 %v683, %v826
    %828 = vmatprep.subr.mxu0 0.0
    %829 = vmatpush1.msra.mxu0 %v93
    %830 = vmatprep.subr.mxu0 0.0
    %831 = vmatpush1.msra.mxu0 %v92
    %832 = vmatprep.subr.mxu0 0.0
    %833 = vmatpush1.msra.mxu0 %v91
    %834 = vmatprep.subr.mxu0 0.0
    %835 = vmatpush1.msra.mxu0 %v90
    %836 = vmatprep.subr.mxu0 0.0
    %837 = vmatpush1.msra.mxu0 %v89
    %838 = vmatprep.subr.mxu0 0.0
    %839 = vmatpush1.msra.mxu0 %v88
    %840 = vmatprep.subr.mxu0 0.0
    %841 = vmatpush1.msra.mxu0 %v87
    %842 = vmatprep.subr.mxu0 0.0
    %843 = vmatpush1.msra.mxu0 %v86
    %844 = vmatprep.subr.mxu0 0.0
    %845 = vmatpush1.msra.mxu0 %v85
    %846 = vmatprep.subr.mxu0 0.0
    %847 = vmatpush1.msra.mxu0 %v84
    %848 = vmatprep.subr.mxu0 0.0
    %849 = vmatpush1.msra.mxu0 %v83
    %850 = vmatprep.subr.mxu0 0.0
    %851 = vmatpush1.msra.mxu0 %v82
    %852 = vmatprep.subr.mxu0 0.0
    %853 = vmatpush1.msra.mxu0 %v81
    %854 = vmatprep.subr.mxu0 0.0
    %855 = vmatpush1.msra.mxu0 %v80
    %856 = vmatprep.subr.mxu0 0.0
    %857 = vmatpush1.msra.mxu0 %v79
    %858 = vmatprep.subr.mxu0 0.0
    %859 = vmatpush1.msra.mxu0 %v78
    %860 = vmatprep.subr.mxu0 0.0
    %861 = vmatpush2.msra.mxu0 0.0
    %862 = vmatprep.subr.mxu0 0.0
    %863 = vmatpush2.msra.mxu0 0.0
    %864 = vmatprep.subr.mxu0 0.0
    %865 = vmatpush2.msra.mxu0 0.0
    %866 = vmatprep.subr.mxu0 0.0
    %867 = vmatpush2.msra.mxu0 0.0
    %868 = vmatprep.subr.mxu0 0.0
    %869 = vmatpush2.msra.mxu0 0.0
    %870 = vmatprep.subr.mxu0 0.0
    %871 = vmatpush2.msra.mxu0 0.0
    %872 = vmatprep.subr.mxu0 0.0
    %873 = vmatpush2.msra.mxu0 0.0
    %874 = vmatprep.subr.mxu0 0.0
    %875 = vmatpush2.msra.mxu0 0.0
    %876 = vmatprep.subr.mxu0 0.0
    %877 = vmatpush2.msra.mxu0 0.0
    %878 = vmatprep.subr.mxu0 0.0
    %879 = vmatpush2.msra.mxu0 0.0
    %880 = vmatprep.subr.mxu0 0.0
    %881 = vmatpush2.msra.mxu0 0.0
    %882 = vmatprep.subr.mxu0 0.0
    %883 = vmatpush2.msra.mxu0 0.0
    %884 = vmatprep.subr.mxu0 0.0
    %885 = vmatpush2.msra.mxu0 0.0
    %886 = vmatprep.subr.mxu0 0.0
    %887 = vmatpush2.msra.mxu0 0.0
    %888 = vmatprep.subr.mxu0 0.0
    %889 = vmatpush2.msra.mxu0 0.0
    %890 = vmatprep.subr.mxu0 0.0
    %891 = vmatpush2.msra.mxu0 0.0
    %892 = vmatprep.mubr.f32.mxu0 0.0
    %893 = vmatmul.mubr.f32.gmra.mxu0 %v754
    %v894 = vpop.f32.mrf.mxu0
    %v895 = vadd.f32 %v106, %v894
    %v896 = vpop.f32.mrf.mxu0
    %897 = vdwg.mxu0
    %v898 = vmax.f32 %v895, 0.0
    %v899 = vadd.f32 %v755, %v898
    %900 = vmatprep.subr.mxu0 0.0
    %901 = vmatpush1.msra.mxu0 %v93
    %902 = vmatprep.subr.mxu0 0.0
    %903 = vmatpush1.msra.mxu0 %v92
    %904 = vmatprep.subr.mxu0 0.0
    %905 = vmatpush1.msra.mxu0 %v91
    %906 = vmatprep.subr.mxu0 0.0
    %907 = vmatpush1.msra.mxu0 %v90
    %908 = vmatprep.subr.mxu0 0.0
    %909 = vmatpush1.msra.mxu0 %v89
    %910 = vmatprep.subr.mxu0 0.0
    %911 = vmatpush1.msra.mxu0 %v88
    %912 = vmatprep.subr.mxu0 0.0
    %913 = vmatpush1.msra.mxu0 %v87
    %914 = vmatprep.subr.mxu0 0.0
    %915 = vmatpush1.msra.mxu0 %v86
    %916 = vmatprep.subr.mxu0 0.0
    %917 = vmatpush1.msra.mxu0 %v85
    %918 = vmatprep.subr.mxu0 0.0
    %919 = vmatpush1.msra.mxu0 %v84
    %920 = vmatprep.subr.mxu0 0.0
    %921 = vmatpush1.msra.mxu0 %v83
    %922 = vmatprep.subr.mxu0 0.0
    %923 = vmatpush1.msra.mxu0 %v82
    %924 = vmatprep.subr.mxu0 0.0
    %925 = vmatpush1.msra.mxu0 %v81
    %926 = vmatprep.subr.mxu0 0.0
    %927 = vmatpush1.msra.mxu0 %v80
    %928 = vmatprep.subr.mxu0 0.0
    %929 = vmatpush1.msra.mxu0 %v79
    %930 = vmatprep.subr.mxu0 0.0
    %931 = vmatpush1.msra.mxu0 %v78
    %932 = vmatprep.subr.mxu0 0.0
    %933 = vmatpush2.msra.mxu0 0.0
    %934 = vmatprep.subr.mxu0 0.0
    %935 = vmatpush2.msra.mxu0 0.0
    %936 = vmatprep.subr.mxu0 0.0
    %937 = vmatpush2.msra.mxu0 0.0
    %938 = vmatprep.subr.mxu0 0.0
    %939 = vmatpush2.msra.mxu0 0.0
    %940 = vmatprep.subr.mxu0 0.0
    %941 = vmatpush2.msra.mxu0 0.0
    %942 = vmatprep.subr.mxu0 0.0
    %943 = vmatpush2.msra.mxu0 0.0
    %944 = vmatprep.subr.mxu0 0.0
    %945 = vmatpush2.msra.mxu0 0.0
    %946 = vmatprep.subr.mxu0 0.0
    %947 = vmatpush2.msra.mxu0 0.0
    %948 = vmatprep.subr.mxu0 0.0
    %949 = vmatpush2.msra.mxu0 0.0
    %950 = vmatprep.subr.mxu0 0.0
    %951 = vmatpush2.msra.mxu0 0.0
    %952 = vmatprep.subr.mxu0 0.0
    %953 = vmatpush2.msra.mxu0 0.0
    %954 = vmatprep.subr.mxu0 0.0
    %955 = vmatpush2.msra.mxu0 0.0
    %956 = vmatprep.subr.mxu0 0.0
    %957 = vmatpush2.msra.mxu0 0.0
    %958 = vmatprep.subr.mxu0 0.0
    %959 = vmatpush2.msra.mxu0 0.0
    %960 = vmatprep.subr.mxu0 0.0
    %961 = vmatpush2.msra.mxu0 0.0
    %962 = vmatprep.subr.mxu0 0.0
    %963 = vmatpush2.msra.mxu0 0.0
    %964 = vmatprep.mubr.f32.mxu0 0.0
    %965 = vmatmul.mubr.f32.gmra.mxu0 %v826
    %v966 = vpop.f32.mrf.mxu0
    %v967 = vadd.f32 %v106, %v966
    %v968 = vpop.f32.mrf.mxu0
    %969 = vdwg.mxu0
    %v970 = vmax.f32 %v967, 0.0
    %v971 = vadd.f32 %v827, %v970
    %972 = vmatprep.subr.mxu0 0.0
    %973 = vmatpush1.msra.mxu0 %v93
    %974 = vmatprep.subr.mxu0 0.0
    %975 = vmatpush1.msra.mxu0 %v92
    %976 = vmatprep.subr.mxu0 0.0
    %977 = vmatpush1.msra.mxu0 %v91
    %978 = vmatprep.subr.mxu0 0.0
    %979 = vmatpush1.msra.mxu0 %v90
    %980 = vmatprep.subr.mxu0 0.0
    %981 = vmatpush1.msra.mxu0 %v89
    %982 = vmatprep.subr.mxu0 0.0
    %983 = vmatpush1.msra.mxu0 %v88
    %984 = vmatprep.subr.mxu0 0.0
    %985 = vmatpush1.msra.mxu0 %v87
    %986 = vmatprep.subr.mxu0 0.0
    %987 = vmatpush1.msra.mxu0 %v86
    %988 = vmatprep.subr.mxu0 0.0
    %989 = vmatpush1.msra.mxu0 %v85
    %990 = vmatprep.subr.mxu0 0.0
    %991 = vmatpush1.msra.mxu0 %v84
    %992 = vmatprep.subr.mxu0 0.0
    %993 = vmatpush1.msra.mxu0 %v83
    %994 = vmatprep.subr.mxu0 0.0
    %995 = vmatpush1.msra.mxu0 %v82
    %996 = vmatprep.subr.mxu0 0.0
    %997 = vmatpush1.msra.mxu0 %v81
    %998 = vmatprep.subr.mxu0 0.0
    %999 = vmatpush1.msra.mxu0 %v80
    %1000 = vmatprep.subr.mxu0 0.0
    %1001 = vmatpush1.msra.mxu0 %v79
    %1002 = vmatprep.subr.mxu0 0.0
    %1003 = vmatpush1.msra.mxu0 %v78
    %1004 = vmatprep.subr.mxu0 0.0
    %1005 = vmatpush2.msra.mxu0 0.0
    %1006 = vmatprep.subr.mxu0 0.0
    %1007 = vmatpush2.msra.mxu0 0.0
    %1008 = vmatprep.subr.mxu0 0.0
    %1009 = vmatpush2.msra.mxu0 0.0
    %1010 = vmatprep.subr.mxu0 0.0
    %1011 = vmatpush2.msra.mxu0 0.0
    %1012 = vmatprep.subr.mxu0 0.0
    %1013 = vmatpush2.msra.mxu0 0.0
    %1014 = vmatprep.subr.mxu0 0.0
    %1015 = vmatpush2.msra.mxu0 0.0
    %1016 = vmatprep.subr.mxu0 0.0
    %1017 = vmatpush2.msra.mxu0 0.0
    %1018 = vmatprep.subr.mxu0 0.0
    %1019 = vmatpush2.msra.mxu0 0.0
    %1020 = vmatprep.subr.mxu0 0.0
    %1021 = vmatpush2.msra.mxu0 0.0
    %1022 = vmatprep.subr.mxu0 0.0
    %1023 = vmatpush2.msra.mxu0 0.0
    %1024 = vmatprep.subr.mxu0 0.0
    %1025 = vmatpush2.msra.mxu0 0.0
    %1026 = vmatprep.subr.mxu0 0.0
    %1027 = vmatpush2.msra.mxu0 0.0
    %1028 = vmatprep.subr.mxu0 0.0
    %1029 = vmatpush2.msra.mxu0 0.0
    %1030 = vmatprep.subr.mxu0 0.0
    %1031 = vmatpush2.msra.mxu0 0.0
    %1032 = vmatprep.subr.mxu0 0.0
    %1033 = vmatpush2.msra.mxu0 0.0
    %1034 = vmatprep.subr.mxu0 0.0
    %1035 = vmatpush2.msra.mxu0 0.0
    %1036 = vmatprep.mubr.f32.mxu0 0.0
    %1037 = vmatmul.mubr.f32.gmra.mxu0 %v898
    %v1038 = vpop.f32.mrf.mxu0
    %v1039 = vadd.f32 %v106, %v1038
    %v1040 = vpop.f32.mrf.mxu0
    %1041 = vdwg.mxu0
    %v1042 = vmax.f32 %v1039, 0.0
    %v1043 = vadd.f32 %v899, %v1042
    %1044 = vmatprep.subr.mxu0 0.0
    %1045 = vmatpush1.msra.mxu0 %v93
    %1046 = vmatprep.subr.mxu0 0.0
    %1047 = vmatpush1.msra.mxu0 %v92
    %1048 = vmatprep.subr.mxu0 0.0
    %1049 = vmatpush1.msra.mxu0 %v91
    %1050 = vmatprep.subr.mxu0 0.0
    %1051 = vmatpush1.msra.mxu0 %v90
    %1052 = vmatprep.subr.mxu0 0.0
    %1053 = vmatpush1.msra.mxu0 %v89
    %1054 = vmatprep.subr.mxu0 0.0
    %1055 = vmatpush1.msra.mxu0 %v88
    %1056 = vmatprep.subr.mxu0 0.0
    %1057 = vmatpush1.msra.mxu0 %v87
    %1058 = vmatprep.subr.mxu0 0.0
    %1059 = vmatpush1.msra.mxu0 %v86
    %1060 = vmatprep.subr.mxu0 0.0
    %1061 = vmatpush1.msra.mxu0 %v85
    %1062 = vmatprep.subr.mxu0 0.0
    %1063 = vmatpush1.msra.mxu0 %v84
    %1064 = vmatprep.subr.mxu0 0.0
    %1065 = vmatpush1.msra.mxu0 %v83
    %1066 = vmatprep.subr.mxu0 0.0
    %1067 = vmatpush1.msra.mxu0 %v82
    %1068 = vmatprep.subr.mxu0 0.0
    %1069 = vmatpush1.msra.mxu0 %v81
    %1070 = vmatprep.subr.mxu0 0.0
    %1071 = vmatpush1.msra.mxu0 %v80
    %1072 = vmatprep.subr.mxu0 0.0
    %1073 = vmatpush1.msra.mxu0 %v79
    %1074 = vmatprep.subr.mxu0 0.0
    %1075 = vmatpush1.msra.mxu0 %v78
    %1076 = vmatprep.subr.mxu0 0.0
    %1077 = vmatpush2.msra.mxu0 0.0
    %1078 = vmatprep.subr.mxu0 0.0
    %1079 = vmatpush2.msra.mxu0 0.0
    %1080 = vmatprep.subr.mxu0 0.0
    %1081 = vmatpush2.msra.mxu0 0.0
    %1082 = vmatprep.subr.mxu0 0.0
    %1083 = vmatpush2.msra.mxu0 0.0
    %1084 = vmatprep.subr.mxu0 0.0
    %1085 = vmatpush2.msra.mxu0 0.0
    %1086 = vmatprep.subr.mxu0 0.0
    %1087 = vmatpush2.msra.mxu0 0.0
    %1088 = vmatprep.subr.mxu0 0.0
    %1089 = vmatpush2.msra.mxu0 0.0
    %1090 = vmatprep.subr.mxu0 0.0
    %1091 = vmatpush2.msra.mxu0 0.0
    %1092 = vmatprep.subr.mxu0 0.0
    %1093 = vmatpush2.msra.mxu0 0.0
    %1094 = vmatprep.subr.mxu0 0.0
    %1095 = vmatpush2.msra.mxu0 0.0
    %1096 = vmatprep.subr.mxu0 0.0
    %1097 = vmatpush2.msra.mxu0 0.0
    %1098 = vmatprep.subr.mxu0 0.0
    %1099 = vmatpush2.msra.mxu0 0.0
    %1100 = vmatprep.subr.mxu0 0.0
    %1101 = vmatpush2.msra.mxu0 0.0
    %1102 = vmatprep.subr.mxu0 0.0
    %1103 = vmatpush2.msra.mxu0 0.0
    %1104 = vmatprep.subr.mxu0 0.0
    %1105 = vmatpush2.msra.mxu0 0.0
    %1106 = vmatprep.subr.mxu0 0.0
    %1107 = vmatpush2.msra.mxu0 0.0
    %1108 = vmatprep.mubr.f32.mxu0 0.0
    %1109 = vmatmul.mubr.f32.gmra.mxu0 %v970
    %v1110 = vpop.f32.mrf.mxu0
    %v1111 = vadd.f32 %v106, %v1110
    %v1112 = vpop.f32.mrf.mxu0
    %1113 = vdwg.mxu0
    %v1114 = vmax.f32 %v1111, 0.0
    %v1115 = vadd.f32 %v971, %v1114
    %1116 = vmatprep.subr.mxu0 0.0
    %1117 = vmatpush1.msra.mxu0 %v93
    %1118 = vmatprep.subr.mxu0 0.0
    %1119 = vmatpush1.msra.mxu0 %v92
    %1120 = vmatprep.subr.mxu0 0.0
    %1121 = vmatpush1.msra.mxu0 %v91
    %1122 = vmatprep.subr.mxu0 0.0
    %1123 = vmatpush1.msra.mxu0 %v90
    %1124 = vmatprep.subr.mxu0 0.0
    %1125 = vmatpush1.msra.mxu0 %v89
    %1126 = vmatprep.subr.mxu0 0.0
    %1127 = vmatpush1.msra.mxu0 %v88
    %1128 = vmatprep.subr.mxu0 0.0
    %1129 = vmatpush1.msra.mxu0 %v87
    %1130 = vmatprep.subr.mxu0 0.0
    %1131 = vmatpush1.msra.mxu0 %v86
    %1132 = vmatprep.subr.mxu0 0.0
    %1133 = vmatpush1.msra.mxu0 %v85
    %1134 = vmatprep.subr.mxu0 0.0
    %1135 = vmatpush1.msra.mxu0 %v84
    %1136 = vmatprep.subr.mxu0 0.0
    %1137 = vmatpush1.msra.mxu0 %v83
    %1138 = vmatprep.subr.mxu0 0.0
    %1139 = vmatpush1.msra.mxu0 %v82
    %1140 = vmatprep.subr.mxu0 0.0
    %1141 = vmatpush1.msra.mxu0 %v81
    %1142 = vmatprep.subr.mxu0 0.0
    %1143 = vmatpush1.msra.mxu0 %v80
    %1144 = vmatprep.subr.mxu0 0.0
    %1145 = vmatpush1.msra.mxu0 %v79
    %1146 = vmatprep.subr.mxu0 0.0
    %1147 = vmatpush1.msra.mxu0 %v78
    %1148 = vmatprep.subr.mxu0 0.0
    %1149 = vmatpush2.msra.mxu0 0.0
    %1150 = vmatprep.subr.mxu0 0.0
    %1151 = vmatpush2.msra.mxu0 0.0
    %1152 = vmatprep.subr.mxu0 0.0
    %1153 = vmatpush2.msra.mxu0 0.0
    %1154 = vmatprep.subr.mxu0 0.0
    %1155 = vmatpush2.msra.mxu0 0.0
    %1156 = vmatprep.subr.mxu0 0.0
    %1157 = vmatpush2.msra.mxu0 0.0
    %1158 = vmatprep.subr.mxu0 0.0
    %1159 = vmatpush2.msra.mxu0 0.0
    %1160 = vmatprep.subr.mxu0 0.0
    %1161 = vmatpush2.msra.mxu0 0.0
    %1162 = vmatprep.subr.mxu0 0.0
    %1163 = vmatpush2.msra.mxu0 0.0
    %1164 = vmatprep.subr.mxu0 0.0
    %1165 = vmatpush2.msra.mxu0 0.0
    %1166 = vmatprep.subr.mxu0 0.0
    %1167 = vmatpush2.msra.mxu0 0.0
    %1168 = vmatprep.subr.mxu0 0.0
    %1169 = vmatpush2.msra.mxu0 0.0
    %1170 = vmatprep.subr.mxu0 0.0
    %1171 = vmatpush2.msra.mxu0 0.0
    %1172 = vmatprep.subr.mxu0 0.0
    %1173 = vmatpush2.msra.mxu0 0.0
    %1174 = vmatprep.subr.mxu0 0.0
    %1175 = vmatpush2.msra.mxu0 0.0
    %1176 = vmatprep.subr.mxu0 0.0
    %1177 = vmatpush2.msra.mxu0 0.0
    %1178 = vmatprep.subr.mxu0 0.0
    %1179 = vmatpush2.msra.mxu0 0.0
    %1180 = vmatprep.mubr.f32.mxu0 0.0
    %1181 = vmatmul.mubr.f32.gmra.mxu0 %v1042
    %v1182 = vpop.f32.mrf.mxu0
    %v1183 = vadd.f32 %v106, %v1182
    %v1184 = vpop.f32.mrf.mxu0
    %1185 = vdwg.mxu0
    %v1186 = vmax.f32 %v1183, 0.0
    %v1187 = vadd.f32 %v1043, %v1186
    %1188 = vmatprep.subr.mxu0 0.0
    %1189 = vmatpush1.msra.mxu0 %v93
    %1190 = vmatprep.subr.mxu0 0.0
    %1191 = vmatpush1.msra.mxu0 %v92
    %1192 = vmatprep.subr.mxu0 0.0
    %1193 = vmatpush1.msra.mxu0 %v91
    %1194 = vmatprep.subr.mxu0 0.0
    %1195 = vmatpush1.msra.mxu0 %v90
    %1196 = vmatprep.subr.mxu0 0.0
    %1197 = vmatpush1.msra.mxu0 %v89
    %1198 = vmatprep.subr.mxu0 0.0
    %1199 = vmatpush1.msra.mxu0 %v88
    %1200 = vmatprep.subr.mxu0 0.0
    %1201 = vmatpush1.msra.mxu0 %v87
    %1202 = vmatprep.subr.mxu0 0.0
    %1203 = vmatpush1.msra.mxu0 %v86
    %1204 = vmatprep.subr.mxu0 0.0
    %1205 = vmatpush1.msra.mxu0 %v85
    %1206 = vmatprep.subr.mxu0 0.0
    %1207 = vmatpush1.msra.mxu0 %v84
    %1208 = vmatprep.subr.mxu0 0.0
    %1209 = vmatpush1.msra.mxu0 %v83
    %1210 = vmatprep.subr.mxu0 0.0
    %1211 = vmatpush1.msra.mxu0 %v82
    %1212 = vmatprep.subr.mxu0 0.0
    %1213 = vmatpush1.msra.mxu0 %v81
    %1214 = vmatprep.subr.mxu0 0.0
    %1215 = vmatpush1.msra.mxu0 %v80
    %1216 = vmatprep.subr.mxu0 0.0
    %1217 = vmatpush1.msra.mxu0 %v79
    %1218 = vmatprep.subr.mxu0 0.0
    %1219 = vmatpush1.msra.mxu0 %v78
    %1220 = vmatprep.subr.mxu0 0.0
    %1221 = vmatpush2.msra.mxu0 0.0
    %1222 = vmatprep.subr.mxu0 0.0
    %1223 = vmatpush2.msra.mxu0 0.0
    %1224 = vmatprep.subr.mxu0 0.0
    %1225 = vmatpush2.msra.mxu0 0.0
    %1226 = vmatprep.subr.mxu0 0.0
    %1227 = vmatpush2.msra.mxu0 0.0
    %1228 = vmatprep.subr.mxu0 0.0
    %1229 = vmatpush2.msra.mxu0 0.0
    %1230 = vmatprep.subr.mxu0 0.0
    %1231 = vmatpush2.msra.mxu0 0.0
    %1232 = vmatprep.subr.mxu0 0.0
    %1233 = vmatpush2.msra.mxu0 0.0
    %1234 = vmatprep.subr.mxu0 0.0
    %1235 = vmatpush2.msra.mxu0 0.0
    %1236 = vmatprep.subr.mxu0 0.0
    %1237 = vmatpush2.msra.mxu0 0.0
    %1238 = vmatprep.subr.mxu0 0.0
    %1239 = vmatpush2.msra.mxu0 0.0
    %1240 = vmatprep.subr.mxu0 0.0
    %1241 = vmatpush2.msra.mxu0 0.0
    %1242 = vmatprep.subr.mxu0 0.0
    %1243 = vmatpush2.msra.mxu0 0.0
    %1244 = vmatprep.subr.mxu0 0.0
    %1245 = vmatpush2.msra.mxu0 0.0
    %1246 = vmatprep.subr.mxu0 0.0
    %1247 = vmatpush2.msra.mxu0 0.0
    %1248 = vmatprep.subr.mxu0 0.0
    %1249 = vmatpush2.msra.mxu0 0.0
    %1250 = vmatprep.subr.mxu0 0.0
    %1251 = vmatpush2.msra.mxu0 0.0
    %1252 = vmatprep.mubr.f32.mxu0 0.0
    %1253 = vmatmul.mubr.f32.gmra.mxu0 %v1114
    %v1254 = vpop.f32.mrf.mxu0
    %v1255 = vadd.f32 %v106, %v1254
    %v1256 = vpop.f32.mrf.mxu0
    %1257 = vdwg.mxu0
    %v1258 = vmax.f32 %v1255, 0.0
    %v1259 = vadd.f32 %v1115, %v1258
    %v1260 = vmul.f32 %v1187, 0.125
    %1261 = vst [vmem:[#allocation8] sm:$0xff] %v1260
    %v1262 = vmul.f32 %v1259, 0.125
    %1263 = vst [vmem:[#allocation8 + $0x8] sm:$0xff] %v1262
    // Predicated region
    $region34: #{tpu_custom_call.1} parent=1 // pred_check
      _
    $region35: #{tpu_custom_call.1} parent=1 // pred_check_branch
      %1265 = sbr.rel (0) target = $region37
    $region36: #{tpu_custom_call.1} parent=1 // pred_region
      %s1267 = ssub.s32 256, 256
      %1268 = vsyncadd [#allocation4], %s1267
      %s1269 = sshll.u32 [#allocation8], 4
      %s1270 = int_to_ptr.vmem [resolvable:$true] %s1269
      %1275 = dma.vmem_to_hbm [thread:$0]  %s1270, 256, %s5, [#allocation4], 128, 128, 8
    $region37: #{tpu_custom_call.1} parent=1 // pred_fallthru
      _
    // Predicated region
    $region38: #{tpu_custom_call.1} parent=1 // pred_check
      _
    $region39: #{tpu_custom_call.1} parent=1 // pred_check_branch
      %1277 = sbr.rel (0) target = $region41
    $region40: #{tpu_custom_call.1} parent=1 // pred_region
      %1278 = dma.done [#allocation4], 256
    $region41: #{tpu_custom_call.1} parent=1 // pred_fallthru
      _
    %1279 = vsyncpa [#allocation3], 1
    %1280 = vsyncpa [#allocation6], 1
    %1281 = vsyncpa [#allocation4], 1

// kernel: tpu_custom_call.1
$region0: #{tpu_custom_call.1}
  #allocation0 [shape = 'u32[]', space=smem, size = 0x4, offset = 0x4, fixed_abs, tag = 'smem constant byte address 0x4 - core index']
  #allocation1 [shape = 'u32[144,128]{1,0:T(1,128)}', space=vmem, size = 0x12000, scoped, tag = 'internal scratch']
  %s0 = inlined_call_operand.hbm [shape: f32[16,128], index: 0, kind: input, shape index: {}]
  %s1 = inlined_call_operand.hbm [shape: f32[128,128], index: 1, kind: input, shape index: {}]
  %s2 = inlined_call_operand.vmem [shape: f32[1,128], index: 2, kind: input, shape index: {}]
  %s3 = inlined_call_operand.hbm [shape: f32[128,128], index: 3, kind: input, shape index: {}]
  %s4 = inlined_call_operand.vmem [shape: f32[1,128], index: 4, kind: input, shape index: {}]
  %s5 = inlined_call_operand.hbm [shape: f32[16,128], index: 5, kind: output, shape index: {}]
  %s6 = sld [smem:[#allocation0]]
  $region42: #{tpu_custom_call.1} parent=0
    _
  %s8 = ssub.s32 1, %s6
  %s9 = scalar_select 0, %s8, %s6
  $region1: #{tpu_custom_call.1} parent=0
    #allocation2 [shape = 'u8[8192]{0}', space=vmem, size = 0x2000, scoped, tag = 'input window, operand 0, single buffered']
    #allocation3 [shape = 's32[1]{0}', space=sflag, size = 0x4, scoped, tag = 'scoped memory for tpu_custom_call.1']
    #allocation4 [shape = 's32[1]{0}', space=sflag, size = 0x4, scoped, tag = 'scoped memory for tpu_custom_call.1']
    #allocation5 [shape = 'u8[65536]{0}', space=vmem, size = 0x10000, scoped, tag = 'input window, operand 1, single buffered']
    #allocation6 [shape = 's32[1]{0}', space=sflag, size = 0x4, scoped, tag = 'scoped memory for tpu_custom_call.1']
    #allocation7 [shape = 'u8[65536]{0}', space=vmem, size = 0x10000, scoped, tag = 'input window, operand 3, single buffered']
    #allocation8 [shape = 'u8[8192]{0}', space=vmem, size = 0x2000, scoped, tag = 'output window, operand 0, single buffered']
    %10 = vsyncpa [#allocation3], 0
    %11 = vsyncpa [#allocation6], 0
    %12 = vsyncpa [#allocation4], 0
    // Predicated region
    $region2: #{tpu_custom_call.1} parent=1 // pred_check
      _
    $region3: #{tpu_custom_call.1} parent=1 // pred_check_branch
      %14 = sbr.rel (0) target = $region5
    $region4: #{tpu_custom_call.1} parent=1 // pred_region
      %s16 = ssub.s32 256, 256
      %17 = vsyncadd [#allocation3], %s16
      %s18 = sshll.u32 [#allocation2], 4
      %s19 = int_to_ptr.vmem [resolvable:$true] %s18
      %24 = dma.hbm_to_vmem [thread:$0]  %s0, 256, %s19, [#allocation3], 128, 128, 8
    $region5: #{tpu_custom_call.1} parent=1 // pred_fallthru
      _
    // Predicated region
    $region6: #{tpu_custom_call.1} parent=1 // pred_check
      _
    $region7: #{tpu_custom_call.1} parent=1 // pred_check_branch
      %26 = sbr.rel (0) target = $region9
    $region8: #{tpu_custom_call.1} parent=1 // pred_region
      %s28 = ssub.s32 2048, 2048
      %29 = vsyncadd [#allocation6], %s28
      %s30 = sshll.u32 [#allocation5], 4
      %s31 = int_to_ptr.vmem [resolvable:$true] %s30
      %36 = dma.hbm_to_vmem [thread:$0]  %s1, 2048, %s31, [#allocation6], 128, 128, 8
    $region9: #{tpu_custom_call.1} parent=1 // pred_fallthru
      _
    // Predicated region
    $region10: #{tpu_custom_call.1} parent=1 // pred_check
      _
    $region11: #{tpu_custom_call.1} parent=1 // pred_check_branch
      %38 = sbr.rel (0) target = $region13
    $region12: #{tpu_custom_call.1} parent=1 // pred_region
      _
    $region13: #{tpu_custom_call.1} parent=1 // pred_fallthru
      _
    // Predicated region
    $region14: #{tpu_custom_call.1} parent=1 // pred_check
      _
    $region15: #{tpu_custom_call.1} parent=1 // pred_check_branch
      %40 = sbr.rel (0) target = $region17
    $region16: #{tpu_custom_call.1} parent=1 // pred_region
      %s42 = ssub.s32 2048, 2048
      %43 = vsyncadd [#allocation6], %s42
      %s44 = sshll.u32 [#allocation7], 4
      %s45 = int_to_ptr.vmem [resolvable:$true] %s44
      %50 = dma.hbm_to_vmem [thread:$0]  %s3, 2048, %s45, [#allocation6], 128, 128, 8
    $region17: #{tpu_custom_call.1} parent=1 // pred_fallthru
      _
    // Predicated region
    $region18: #{tpu_custom_call.1} parent=1 // pred_check
      _
    $region19: #{tpu_custom_call.1} parent=1 // pred_check_branch
      %52 = sbr.rel (0) target = $region21
    $region20: #{tpu_custom_call.1} parent=1 // pred_region
      _
    $region21: #{tpu_custom_call.1} parent=1 // pred_fallthru
      _
    // Predicated region
    $region22: #{tpu_custom_call.1} parent=1 // pred_check
      _
    $region23: #{tpu_custom_call.1} parent=1 // pred_check_branch
      %54 = sbr.rel (0) target = $region25
    $region24: #{tpu_custom_call.1} parent=1 // pred_region
      %55 = dma.done [#allocation3], 256
    $region25: #{tpu_custom_call.1} parent=1 // pred_fallthru
      _
    // Predicated region
    $region26: #{tpu_custom_call.1} parent=1 // pred_check
      _
    $region27: #{tpu_custom_call.1} parent=1 // pred_check_branch
      %57 = sbr.rel (0) target = $region29
    $region28: #{tpu_custom_call.1} parent=1 // pred_region
      %58 = dma.done [#allocation6], 2048
    $region29: #{tpu_custom_call.1} parent=1 // pred_fallthru
      _
    // Predicated region
    $region30: #{tpu_custom_call.1} parent=1 // pred_check
      _
    $region31: #{tpu_custom_call.1} parent=1 // pred_check_branch
      %60 = sbr.rel (0) target = $region33
    $region32: #{tpu_custom_call.1} parent=1 // pred_region
      %61 = dma.done [#allocation6], 2048
    $region33: #{tpu_custom_call.1} parent=1 // pred_fallthru
      _
    %v62 = vld [vmem:[#allocation5] sm:$0xff]
    %v63 = vld [vmem:[#allocation5 + $0x8] sm:$0xff]
    %v64 = vld [vmem:[#allocation5 + $0x10] sm:$0xff]
    %v65 = vld [vmem:[#allocation5 + $0x18] sm:$0xff]
    %v66 = vld [vmem:[#allocation5 + $0x20] sm:$0xff]
    %v67 = vld [vmem:[#allocation5 + $0x28] sm:$0xff]
    %v68 = vld [vmem:[#allocation5 + $0x30] sm:$0xff]
    %v69 = vld [vmem:[#allocation5 + $0x38] sm:$0xff]
    %v70 = vld [vmem:[#allocation5 + $0x40] sm:$0xff]
    %v71 = vld [vmem:[#allocation5 + $0x48] sm:$0xff]
    %v72 = vld [vmem:[#allocation5 + $0x50] sm:$0xff]
    %v73 = vld [vmem:[#allocation5 + $0x58] sm:$0xff]
    %v74 = vld [vmem:[#allocation5 + $0x60] sm:$0xff]
    %v75 = vld [vmem:[#allocation5 + $0x68] sm:$0xff]
    %v76 = vld [vmem:[#allocation5 + $0x70] sm:$0xff]
    %v77 = vld [vmem:[#allocation5 + $0x78] sm:$0xff]
    %v78 = vld [vmem:[#allocation7] sm:$0xff]
    %v79 = vld [vmem:[#allocation7 + $0x8] sm:$0xff]
    %v80 = vld [vmem:[#allocation7 + $0x10] sm:$0xff]
    %v81 = vld [vmem:[#allocation7 + $0x18] sm:$0xff]
    %v82 = vld [vmem:[#allocation7 + $0x20] sm:$0xff]
    %v83 = vld [vmem:[#allocation7 + $0x28] sm:$0xff]
    %v84 = vld [vmem:[#allocation7 + $0x30] sm:$0xff]
    %v85 = vld [vmem:[#allocation7 + $0x38] sm:$0xff]
    %v86 = vld [vmem:[#allocation7 + $0x40] sm:$0xff]
    %v87 = vld [vmem:[#allocation7 + $0x48] sm:$0xff]
    %v88 = vld [vmem:[#allocation7 + $0x50] sm:$0xff]
    %v89 = vld [vmem:[#allocation7 + $0x58] sm:$0xff]
    %v90 = vld [vmem:[#allocation7 + $0x60] sm:$0xff]
    %v91 = vld [vmem:[#allocation7 + $0x68] sm:$0xff]
    %v92 = vld [vmem:[#allocation7 + $0x70] sm:$0xff]
    %v93 = vld [vmem:[#allocation7 + $0x78] sm:$0xff]
    %v94 = vld [vmem:[%s2] sm:$0x1]
    %v96 = vlaneseq
    %v97 = vshrl.u32 %v96, 7
    %v98 = vsub.s32 0, %v97
    %v99 = vrot.slane %v94, %v98
    %v101 = vld [vmem:[%s4] sm:$0x1]
    %v103 = vlaneseq
    %v104 = vshrl.u32 %v103, 7
    %v105 = vsub.s32 0, %v104
    %v106 = vrot.slane %v101, %v105
    %v108 = vld [vmem:[#allocation2] sm:$0xff]
    %109 = vmatprep.subr.mxu0 0.0
    %110 = vmatpush1.msra.mxu0 %v77
    %111 = vmatprep.subr.mxu0 0.0
    %112 = vmatpush1.msra.mxu0 %v76
    %113 = vmatprep.subr.mxu0 0.0
    %114 = vmatpush1.msra.mxu0 %v75
    %115 = vmatprep.subr.mxu0 0.0
    %116 = vmatpush1.msra.mxu0 %v74
    %117 = vmatprep.subr.mxu0 0.0
    %118 = vmatpush1.msra.mxu0 %v73
    %119 = vmatprep.subr.mxu0 0.0
    %120 = vmatpush1.msra.mxu0 %v72
    %121 = vmatprep.subr.mxu0 0.0
    %122 = vmatpush1.msra.mxu0 %v71
    %123 = vmatprep.subr.mxu0 0.0
    %124 = vmatpush1.msra.mxu0 %v70
    %125 = vmatprep.subr.mxu0 0.0
    %126 = vmatpush1.msra.mxu0 %v69
    %127 = vmatprep.subr.mxu0 0.0
    %128 = vmatpush1.msra.mxu0 %v68
    %129 = vmatprep.subr.mxu0 0.0
    %130 = vmatpush1.msra.mxu0 %v67
    %131 = vmatprep.subr.mxu0 0.0
    %132 = vmatpush1.msra.mxu0 %v66
    %133 = vmatprep.subr.mxu0 0.0
    %134 = vmatpush1.msra.mxu0 %v65
    %135 = vmatprep.subr.mxu0 0.0
    %136 = vmatpush1.msra.mxu0 %v64
    %137 = vmatprep.subr.mxu0 0.0
    %138 = vmatpush1.msra.mxu0 %v63
    %139 = vmatprep.subr.mxu0 0.0
    %140 = vmatpush1.msra.mxu0 %v62
    %141 = vmatprep.subr.mxu0 0.0
    %142 = vmatpush2.msra.mxu0 0.0
    %143 = vmatprep.subr.mxu0 0.0
    %144 = vmatpush2.msra.mxu0 0.0
    %145 = vmatprep.subr.mxu0 0.0
    %146 = vmatpush2.msra.mxu0 0.0
    %147 = vmatprep.subr.mxu0 0.0
    %148 = vmatpush2.msra.mxu0 0.0
    %149 = vmatprep.subr.mxu0 0.0
    %150 = vmatpush2.msra.mxu0 0.0
    %151 = vmatprep.subr.mxu0 0.0
    %152 = vmatpush2.msra.mxu0 0.0
    %153 = vmatprep.subr.mxu0 0.0
    %154 = vmatpush2.msra.mxu0 0.0
    %155 = vmatprep.subr.mxu0 0.0
    %156 = vmatpush2.msra.mxu0 0.0
    %157 = vmatprep.subr.mxu0 0.0
    %158 = vmatpush2.msra.mxu0 0.0
    %159 = vmatprep.subr.mxu0 0.0
    %160 = vmatpush2.msra.mxu0 0.0
    %161 = vmatprep.subr.mxu0 0.0
    %162 = vmatpush2.msra.mxu0 0.0
    %163 = vmatprep.subr.mxu0 0.0
    %164 = vmatpush2.msra.mxu0 0.0
    %165 = vmatprep.subr.mxu0 0.0
    %166 = vmatpush2.msra.mxu0 0.0
    %167 = vmatprep.subr.mxu0 0.0
    %168 = vmatpush2.msra.mxu0 0.0
    %169 = vmatprep.subr.mxu0 0.0
    %170 = vmatpush2.msra.mxu0 0.0
    %171 = vmatprep.subr.mxu0 0.0
    %172 = vmatpush2.msra.mxu0 0.0
    %173 = vmatprep.mubr.f32.mxu0 0.0
    %174 = vmatmul.mubr.f32.gmra.mxu0 %v108
    %v175 = vpop.f32.mrf.mxu0
    %v176 = vadd.f32 %v99, %v175
    %v177 = vpop.f32.mrf.mxu0
    %178 = vdwg.mxu0
    %v179 = vmax.f32 %v176, 0.0
    %v180 = vld [vmem:[#allocation2 + $0x8] sm:$0xff]
    %181 = vmatprep.subr.mxu0 0.0
    %182 = vmatpush1.msra.mxu0 %v77
    %183 = vmatprep.subr.mxu0 0.0
    %184 = vmatpush1.msra.mxu0 %v76
    %185 = vmatprep.subr.mxu0 0.0
    %186 = vmatpush1.msra.mxu0 %v75
    %187 = vmatprep.subr.mxu0 0.0
    %188 = vmatpush1.msra.mxu0 %v74
    %189 = vmatprep.subr.mxu0 0.0
    %190 = vmatpush1.msra.mxu0 %v73
    %191 = vmatprep.subr.mxu0 0.0
    %192 = vmatpush1.msra.mxu0 %v72
    %193 = vmatprep.subr.mxu0 0.0
    %194 = vmatpush1.msra.mxu0 %v71
    %195 = vmatprep.subr.mxu0 0.0
    %196 = vmatpush1.msra.mxu0 %v70
    %197 = vmatprep.subr.mxu0 0.0
    %198 = vmatpush1.msra.mxu0 %v69
    %199 = vmatprep.subr.mxu0 0.0
    %200 = vmatpush1.msra.mxu0 %v68
    %201 = vmatprep.subr.mxu0 0.0
    %202 = vmatpush1.msra.mxu0 %v67
    %203 = vmatprep.subr.mxu0 0.0
    %204 = vmatpush1.msra.mxu0 %v66
    %205 = vmatprep.subr.mxu0 0.0
    %206 = vmatpush1.msra.mxu0 %v65
    %207 = vmatprep.subr.mxu0 0.0
    %208 = vmatpush1.msra.mxu0 %v64
    %209 = vmatprep.subr.mxu0 0.0
    %210 = vmatpush1.msra.mxu0 %v63
    %211 = vmatprep.subr.mxu0 0.0
    %212 = vmatpush1.msra.mxu0 %v62
    %213 = vmatprep.subr.mxu0 0.0
    %214 = vmatpush2.msra.mxu0 0.0
    %215 = vmatprep.subr.mxu0 0.0
    %216 = vmatpush2.msra.mxu0 0.0
    %217 = vmatprep.subr.mxu0 0.0
    %218 = vmatpush2.msra.mxu0 0.0
    %219 = vmatprep.subr.mxu0 0.0
    %220 = vmatpush2.msra.mxu0 0.0
    %221 = vmatprep.subr.mxu0 0.0
    %222 = vmatpush2.msra.mxu0 0.0
    %223 = vmatprep.subr.mxu0 0.0
    %224 = vmatpush2.msra.mxu0 0.0
    %225 = vmatprep.subr.mxu0 0.0
    %226 = vmatpush2.msra.mxu0 0.0
    %227 = vmatprep.subr.mxu0 0.0
    %228 = vmatpush2.msra.mxu0 0.0
    %229 = vmatprep.subr.mxu0 0.0
    %230 = vmatpush2.msra.mxu0 0.0
    %231 = vmatprep.subr.mxu0 0.0
    %232 = vmatpush2.msra.mxu0 0.0
    %233 = vmatprep.subr.mxu0 0.0
    %234 = vmatpush2.msra.mxu0 0.0
    %235 = vmatprep.subr.mxu0 0.0
    %236 = vmatpush2.msra.mxu0 0.0
    %237 = vmatprep.subr.mxu0 0.0
    %238 = vmatpush2.msra.mxu0 0.0
    %239 = vmatprep.subr.mxu0 0.0
    %240 = vmatpush2.msra.mxu0 0.0
    %241 = vmatprep.subr.mxu0 0.0
    %242 = vmatpush2.msra.mxu0 0.0
    %243 = vmatprep.subr.mxu0 0.0
    %244 = vmatpush2.msra.mxu0 0.0
    %245 = vmatprep.mubr.f32.mxu0 0.0
    %246 = vmatmul.mubr.f32.gmra.mxu0 %v180
    %v247 = vpop.f32.mrf.mxu0
    %v248 = vadd.f32 %v99, %v247
    %v249 = vpop.f32.mrf.mxu0
    %250 = vdwg.mxu0
    %v251 = vmax.f32 %v248, 0.0
    %252 = vmatprep.subr.mxu0 0.0
    %253 = vmatpush1.msra.mxu0 %v93
    %254 = vmatprep.subr.mxu0 0.0
    %255 = vmatpush1.msra.mxu0 %v92
    %256 = vmatprep.subr.mxu0 0.0
    %257 = vmatpush1.msra.mxu0 %v91
    %258 = vmatprep.subr.mxu0 0.0
    %259 = vmatpush1.msra.mxu0 %v90
    %260 = vmatprep.subr.mxu0 0.0
    %261 = vmatpush1.msra.mxu0 %v89
    %262 = vmatprep.subr.mxu0 0.0
    %263 = vmatpush1.msra.mxu0 %v88
    %264 = vmatprep.subr.mxu0 0.0
    %265 = vmatpush1.msra.mxu0 %v87
    %266 = vmatprep.subr.mxu0 0.0
    %267 = vmatpush1.msra.mxu0 %v86
    %268 = vmatprep.subr.mxu0 0.0
    %269 = vmatpush1.msra.mxu0 %v85
    %270 = vmatprep.subr.mxu0 0.0
    %271 = vmatpush1.msra.mxu0 %v84
    %272 = vmatprep.subr.mxu0 0.0
    %273 = vmatpush1.msra.mxu0 %v83
    %274 = vmatprep.subr.mxu0 0.0
    %275 = vmatpush1.msra.mxu0 %v82
    %276 = vmatprep.subr.mxu0 0.0
    %277 = vmatpush1.msra.mxu0 %v81
    %278 = vmatprep.subr.mxu0 0.0
    %279 = vmatpush1.msra.mxu0 %v80
    %280 = vmatprep.subr.mxu0 0.0
    %281 = vmatpush1.msra.mxu0 %v79
    %282 = vmatprep.subr.mxu0 0.0
    %283 = vmatpush1.msra.mxu0 %v78
    %284 = vmatprep.subr.mxu0 0.0
    %285 = vmatpush2.msra.mxu0 0.0
    %286 = vmatprep.subr.mxu0 0.0
    %287 = vmatpush2.msra.mxu0 0.0
    %288 = vmatprep.subr.mxu0 0.0
    %289 = vmatpush2.msra.mxu0 0.0
    %290 = vmatprep.subr.mxu0 0.0
    %291 = vmatpush2.msra.mxu0 0.0
    %292 = vmatprep.subr.mxu0 0.0
    %293 = vmatpush2.msra.mxu0 0.0
    %294 = vmatprep.subr.mxu0 0.0
    %295 = vmatpush2.msra.mxu0 0.0
    %296 = vmatprep.subr.mxu0 0.0
    %297 = vmatpush2.msra.mxu0 0.0
    %298 = vmatprep.subr.mxu0 0.0
    %299 = vmatpush2.msra.mxu0 0.0
    %300 = vmatprep.subr.mxu0 0.0
    %301 = vmatpush2.msra.mxu0 0.0
    %302 = vmatprep.subr.mxu0 0.0
    %303 = vmatpush2.msra.mxu0 0.0
    %304 = vmatprep.subr.mxu0 0.0
    %305 = vmatpush2.msra.mxu0 0.0
    %306 = vmatprep.subr.mxu0 0.0
    %307 = vmatpush2.msra.mxu0 0.0
    %308 = vmatprep.subr.mxu0 0.0
    %309 = vmatpush2.msra.mxu0 0.0
    %310 = vmatprep.subr.mxu0 0.0
    %311 = vmatpush2.msra.mxu0 0.0
    %312 = vmatprep.subr.mxu0 0.0
    %313 = vmatpush2.msra.mxu0 0.0
    %314 = vmatprep.subr.mxu0 0.0
    %315 = vmatpush2.msra.mxu0 0.0
    %316 = vmatprep.mubr.f32.mxu0 0.0
    %317 = vmatmul.mubr.f32.gmra.mxu0 %v179
    %v318 = vpop.f32.mrf.mxu0
    %v319 = vadd.f32 %v106, %v318
    %v320 = vpop.f32.mrf.mxu0
    %321 = vdwg.mxu0
    %v322 = vmax.f32 %v319, 0.0
    %v323 = vadd.f32 %v179, %v322
    %324 = vmatprep.subr.mxu0 0.0
    %325 = vmatpush1.msra.mxu0 %v93
    %326 = vmatprep.subr.mxu0 0.0
    %327 = vmatpush1.msra.mxu0 %v92
    %328 = vmatprep.subr.mxu0 0.0
    %329 = vmatpush1.msra.mxu0 %v91
    %330 = vmatprep.subr.mxu0 0.0
    %331 = vmatpush1.msra.mxu0 %v90
    %332 = vmatprep.subr.mxu0 0.0
    %333 = vmatpush1.msra.mxu0 %v89
    %334 = vmatprep.subr.mxu0 0.0
    %335 = vmatpush1.msra.mxu0 %v88
    %336 = vmatprep.subr.mxu0 0.0
    %337 = vmatpush1.msra.mxu0 %v87
    %338 = vmatprep.subr.mxu0 0.0
    %339 = vmatpush1.msra.mxu0 %v86
    %340 = vmatprep.subr.mxu0 0.0
    %341 = vmatpush1.msra.mxu0 %v85
    %342 = vmatprep.subr.mxu0 0.0
    %343 = vmatpush1.msra.mxu0 %v84
    %344 = vmatprep.subr.mxu0 0.0
    %345 = vmatpush1.msra.mxu0 %v83
    %346 = vmatprep.subr.mxu0 0.0
    %347 = vmatpush1.msra.mxu0 %v82
    %348 = vmatprep.subr.mxu0 0.0
    %349 = vmatpush1.msra.mxu0 %v81
    %350 = vmatprep.subr.mxu0 0.0
    %351 = vmatpush1.msra.mxu0 %v80
    %352 = vmatprep.subr.mxu0 0.0
    %353 = vmatpush1.msra.mxu0 %v79
    %354 = vmatprep.subr.mxu0 0.0
    %355 = vmatpush1.msra.mxu0 %v78
    %356 = vmatprep.subr.mxu0 0.0
    %357 = vmatpush2.msra.mxu0 0.0
    %358 = vmatprep.subr.mxu0 0.0
    %359 = vmatpush2.msra.mxu0 0.0
    %360 = vmatprep.subr.mxu0 0.0
    %361 = vmatpush2.msra.mxu0 0.0
    %362 = vmatprep.subr.mxu0 0.0
    %363 = vmatpush2.msra.mxu0 0.0
    %364 = vmatprep.subr.mxu0 0.0
    %365 = vmatpush2.msra.mxu0 0.0
    %366 = vmatprep.subr.mxu0 0.0
    %367 = vmatpush2.msra.mxu0 0.0
    %368 = vmatprep.subr.mxu0 0.0
    %369 = vmatpush2.msra.mxu0 0.0
    %370 = vmatprep.subr.mxu0 0.0
    %371 = vmatpush2.msra.mxu0 0.0
    %372 = vmatprep.subr.mxu0 0.0
    %373 = vmatpush2.msra.mxu0 0.0
    %374 = vmatprep.subr.mxu0 0.0
    %375 = vmatpush2.msra.mxu0 0.0
    %376 = vmatprep.subr.mxu0 0.0
    %377 = vmatpush2.msra.mxu0 0.0
    %378 = vmatprep.subr.mxu0 0.0
    %379 = vmatpush2.msra.mxu0 0.0
    %380 = vmatprep.subr.mxu0 0.0
    %381 = vmatpush2.msra.mxu0 0.0
    %382 = vmatprep.subr.mxu0 0.0
    %383 = vmatpush2.msra.mxu0 0.0
    %384 = vmatprep.subr.mxu0 0.0
    %385 = vmatpush2.msra.mxu0 0.0
    %386 = vmatprep.subr.mxu0 0.0
    %387 = vmatpush2.msra.mxu0 0.0
    %388 = vmatprep.mubr.f32.mxu0 0.0
    %389 = vmatmul.mubr.f32.gmra.mxu0 %v251
    %v390 = vpop.f32.mrf.mxu0
    %v391 = vadd.f32 %v106, %v390
    %v392 = vpop.f32.mrf.mxu0
    %393 = vdwg.mxu0
    %v394 = vmax.f32 %v391, 0.0
    %v395 = vadd.f32 %v251, %v394
    %396 = vmatprep.subr.mxu0 0.0
    %397 = vmatpush1.msra.mxu0 %v93
    %398 = vmatprep.subr.mxu0 0.0
    %399 = vmatpush1.msra.mxu0 %v92
    %400 = vmatprep.subr.mxu0 0.0
    %401 = vmatpush1.msra.mxu0 %v91
    %402 = vmatprep.subr.mxu0 0.0
    %403 = vmatpush1.msra.mxu0 %v90
    %404 = vmatprep.subr.mxu0 0.0
    %405 = vmatpush1.msra.mxu0 %v89
    %406 = vmatprep.subr.mxu0 0.0
    %407 = vmatpush1.msra.mxu0 %v88
    %408 = vmatprep.subr.mxu0 0.0
    %409 = vmatpush1.msra.mxu0 %v87
    %410 = vmatprep.subr.mxu0 0.0
    %411 = vmatpush1.msra.mxu0 %v86
    %412 = vmatprep.subr.mxu0 0.0
    %413 = vmatpush1.msra.mxu0 %v85
    %414 = vmatprep.subr.mxu0 0.0
    %415 = vmatpush1.msra.mxu0 %v84
    %416 = vmatprep.subr.mxu0 0.0
    %417 = vmatpush1.msra.mxu0 %v83
    %418 = vmatprep.subr.mxu0 0.0
    %419 = vmatpush1.msra.mxu0 %v82
    %420 = vmatprep.subr.mxu0 0.0
    %421 = vmatpush1.msra.mxu0 %v81
    %422 = vmatprep.subr.mxu0 0.0
    %423 = vmatpush1.msra.mxu0 %v80
    %424 = vmatprep.subr.mxu0 0.0
    %425 = vmatpush1.msra.mxu0 %v79
    %426 = vmatprep.subr.mxu0 0.0
    %427 = vmatpush1.msra.mxu0 %v78
    %428 = vmatprep.subr.mxu0 0.0
    %429 = vmatpush2.msra.mxu0 0.0
    %430 = vmatprep.subr.mxu0 0.0
    %431 = vmatpush2.msra.mxu0 0.0
    %432 = vmatprep.subr.mxu0 0.0
    %433 = vmatpush2.msra.mxu0 0.0
    %434 = vmatprep.subr.mxu0 0.0
    %435 = vmatpush2.msra.mxu0 0.0
    %436 = vmatprep.subr.mxu0 0.0
    %437 = vmatpush2.msra.mxu0 0.0
    %438 = vmatprep.subr.mxu0 0.0
    %439 = vmatpush2.msra.mxu0 0.0
    %440 = vmatprep.subr.mxu0 0.0
    %441 = vmatpush2.msra.mxu0 0.0
    %442 = vmatprep.subr.mxu0 0.0
    %443 = vmatpush2.msra.mxu0 0.0
    %444 = vmatprep.subr.mxu0 0.0
    %445 = vmatpush2.msra.mxu0 0.0
    %446 = vmatprep.subr.mxu0 0.0
    %447 = vmatpush2.msra.mxu0 0.0
    %448 = vmatprep.subr.mxu0 0.0
    %449 = vmatpush2.msra.mxu0 0.0
    %450 = vmatprep.subr.mxu0 0.0
    %451 = vmatpush2.msra.mxu0 0.0
    %452 = vmatprep.subr.mxu0 0.0
    %453 = vmatpush2.msra.mxu0 0.0
    %454 = vmatprep.subr.mxu0 0.0
    %455 = vmatpush2.msra.mxu0 0.0
    %456 = vmatprep.subr.mxu0 0.0
    %457 = vmatpush2.msra.mxu0 0.0
    %458 = vmatprep.subr.mxu0 0.0
    %459 = vmatpush2.msra.mxu0 0.0
    %460 = vmatprep.mubr.f32.mxu0 0.0
    %461 = vmatmul.mubr.f32.gmra.mxu0 %v322
    %v462 = vpop.f32.mrf.mxu0
    %v463 = vadd.f32 %v106, %v462
    %v464 = vpop.f32.mrf.mxu0
    %465 = vdwg.mxu0
    %v466 = vmax.f32 %v463, 0.0
    %v467 = vadd.f32 %v323, %v466
    %468 = vmatprep.subr.mxu0 0.0
    %469 = vmatpush1.msra.mxu0 %v93
    %470 = vmatprep.subr.mxu0 0.0
    %471 = vmatpush1.msra.mxu0 %v92
    %472 = vmatprep.subr.mxu0 0.0
    %473 = vmatpush1.msra.mxu0 %v91
    %474 = vmatprep.subr.mxu0 0.0
    %475 = vmatpush1.msra.mxu0 %v90
    %476 = vmatprep.subr.mxu0 0.0
    %477 = vmatpush1.msra.mxu0 %v89
    %478 = vmatprep.subr.mxu0 0.0
    %479 = vmatpush1.msra.mxu0 %v88
    %480 = vmatprep.subr.mxu0 0.0
    %481 = vmatpush1.msra.mxu0 %v87
    %482 = vmatprep.subr.mxu0 0.0
    %483 = vmatpush1.msra.mxu0 %v86
    %484 = vmatprep.subr.mxu0 0.0
    %485 = vmatpush1.msra.mxu0 %v85
    %486 = vmatprep.subr.mxu0 0.0
    %487 = vmatpush1.msra.mxu0 %v84
    %488 = vmatprep.subr.mxu0 0.0
    %489 = vmatpush1.msra.mxu0 %v83
    %490 = vmatprep.subr.mxu0 0.0
    %491 = vmatpush1.msra.mxu0 %v82
    %492 = vmatprep.subr.mxu0 0.0
    %493 = vmatpush1.msra.mxu0 %v81
    %494 = vmatprep.subr.mxu0 0.0
    %495 = vmatpush1.msra.mxu0 %v80
    %496 = vmatprep.subr.mxu0 0.0
    %497 = vmatpush1.msra.mxu0 %v79
    %498 = vmatprep.subr.mxu0 0.0
    %499 = vmatpush1.msra.mxu0 %v78
    %500 = vmatprep.subr.mxu0 0.0
    %501 = vmatpush2.msra.mxu0 0.0
    %502 = vmatprep.subr.mxu0 0.0
    %503 = vmatpush2.msra.mxu0 0.0
    %504 = vmatprep.subr.mxu0 0.0
    %505 = vmatpush2.msra.mxu0 0.0
    %506 = vmatprep.subr.mxu0 0.0
    %507 = vmatpush2.msra.mxu0 0.0
    %508 = vmatprep.subr.mxu0 0.0
    %509 = vmatpush2.msra.mxu0 0.0
    %510 = vmatprep.subr.mxu0 0.0
    %511 = vmatpush2.msra.mxu0 0.0
    %512 = vmatprep.subr.mxu0 0.0
    %513 = vmatpush2.msra.mxu0 0.0
    %514 = vmatprep.subr.mxu0 0.0
    %515 = vmatpush2.msra.mxu0 0.0
    %516 = vmatprep.subr.mxu0 0.0
    %517 = vmatpush2.msra.mxu0 0.0
    %518 = vmatprep.subr.mxu0 0.0
    %519 = vmatpush2.msra.mxu0 0.0
    %520 = vmatprep.subr.mxu0 0.0
    %521 = vmatpush2.msra.mxu0 0.0
    %522 = vmatprep.subr.mxu0 0.0
    %523 = vmatpush2.msra.mxu0 0.0
    %524 = vmatprep.subr.mxu0 0.0
    %525 = vmatpush2.msra.mxu0 0.0
    %526 = vmatprep.subr.mxu0 0.0
    %527 = vmatpush2.msra.mxu0 0.0
    %528 = vmatprep.subr.mxu0 0.0
    %529 = vmatpush2.msra.mxu0 0.0
    %530 = vmatprep.subr.mxu0 0.0
    %531 = vmatpush2.msra.mxu0 0.0
    %532 = vmatprep.mubr.f32.mxu0 0.0
    %533 = vmatmul.mubr.f32.gmra.mxu0 %v394
    %v534 = vpop.f32.mrf.mxu0
    %v535 = vadd.f32 %v106, %v534
    %v536 = vpop.f32.mrf.mxu0
    %537 = vdwg.mxu0
    %v538 = vmax.f32 %v535, 0.0
    %v539 = vadd.f32 %v395, %v538
    %540 = vmatprep.subr.mxu0 0.0
    %541 = vmatpush1.msra.mxu0 %v93
    %542 = vmatprep.subr.mxu0 0.0
    %543 = vmatpush1.msra.mxu0 %v92
    %544 = vmatprep.subr.mxu0 0.0
    %545 = vmatpush1.msra.mxu0 %v91
    %546 = vmatprep.subr.mxu0 0.0
    %547 = vmatpush1.msra.mxu0 %v90
    %548 = vmatprep.subr.mxu0 0.0
    %549 = vmatpush1.msra.mxu0 %v89
    %550 = vmatprep.subr.mxu0 0.0
    %551 = vmatpush1.msra.mxu0 %v88
    %552 = vmatprep.subr.mxu0 0.0
    %553 = vmatpush1.msra.mxu0 %v87
    %554 = vmatprep.subr.mxu0 0.0
    %555 = vmatpush1.msra.mxu0 %v86
    %556 = vmatprep.subr.mxu0 0.0
    %557 = vmatpush1.msra.mxu0 %v85
    %558 = vmatprep.subr.mxu0 0.0
    %559 = vmatpush1.msra.mxu0 %v84
    %560 = vmatprep.subr.mxu0 0.0
    %561 = vmatpush1.msra.mxu0 %v83
    %562 = vmatprep.subr.mxu0 0.0
    %563 = vmatpush1.msra.mxu0 %v82
    %564 = vmatprep.subr.mxu0 0.0
    %565 = vmatpush1.msra.mxu0 %v81
    %566 = vmatprep.subr.mxu0 0.0
    %567 = vmatpush1.msra.mxu0 %v80
    %568 = vmatprep.subr.mxu0 0.0
    %569 = vmatpush1.msra.mxu0 %v79
    %570 = vmatprep.subr.mxu0 0.0
    %571 = vmatpush1.msra.mxu0 %v78
    %572 = vmatprep.subr.mxu0 0.0
    %573 = vmatpush2.msra.mxu0 0.0
    %574 = vmatprep.subr.mxu0 0.0
    %575 = vmatpush2.msra.mxu0 0.0
    %576 = vmatprep.subr.mxu0 0.0
    %577 = vmatpush2.msra.mxu0 0.0
    %578 = vmatprep.subr.mxu0 0.0
    %579 = vmatpush2.msra.mxu0 0.0
    %580 = vmatprep.subr.mxu0 0.0
    %581 = vmatpush2.msra.mxu0 0.0
    %582 = vmatprep.subr.mxu0 0.0
    %583 = vmatpush2.msra.mxu0 0.0
    %584 = vmatprep.subr.mxu0 0.0
    %585 = vmatpush2.msra.mxu0 0.0
    %586 = vmatprep.subr.mxu0 0.0
    %587 = vmatpush2.msra.mxu0 0.0
    %588 = vmatprep.subr.mxu0 0.0
    %589 = vmatpush2.msra.mxu0 0.0
    %590 = vmatprep.subr.mxu0 0.0
    %591 = vmatpush2.msra.mxu0 0.0
    %592 = vmatprep.subr.mxu0 0.0
    %593 = vmatpush2.msra.mxu0 0.0
    %594 = vmatprep.subr.mxu0 0.0
    %595 = vmatpush2.msra.mxu0 0.0
    %596 = vmatprep.subr.mxu0 0.0
    %597 = vmatpush2.msra.mxu0 0.0
    %598 = vmatprep.subr.mxu0 0.0
    %599 = vmatpush2.msra.mxu0 0.0
    %600 = vmatprep.subr.mxu0 0.0
    %601 = vmatpush2.msra.mxu0 0.0
    %602 = vmatprep.subr.mxu0 0.0
    %603 = vmatpush2.msra.mxu0 0.0
    %604 = vmatprep.mubr.f32.mxu0 0.0
    %605 = vmatmul.mubr.f32.gmra.mxu0 %v466
    %v606 = vpop.f32.mrf.mxu0
    %v607 = vadd.f32 %v106, %v606
    %v608 = vpop.f32.mrf.mxu0
    %609 = vdwg.mxu0
    %v610 = vmax.f32 %v607, 0.0
    %v611 = vadd.f32 %v467, %v610
    %612 = vmatprep.subr.mxu0 0.0
    %613 = vmatpush1.msra.mxu0 %v93
    %614 = vmatprep.subr.mxu0 0.0
    %615 = vmatpush1.msra.mxu0 %v92
    %616 = vmatprep.subr.mxu0 0.0
    %617 = vmatpush1.msra.mxu0 %v91
    %618 = vmatprep.subr.mxu0 0.0
    %619 = vmatpush1.msra.mxu0 %v90
    %620 = vmatprep.subr.mxu0 0.0
    %621 = vmatpush1.msra.mxu0 %v89
    %622 = vmatprep.subr.mxu0 0.0
    %623 = vmatpush1.msra.mxu0 %v88
    %624 = vmatprep.subr.mxu0 0.0
    %625 = vmatpush1.msra.mxu0 %v87
    %626 = vmatprep.subr.mxu0 0.0
    %627 = vmatpush1.msra.mxu0 %v86
    %628 = vmatprep.subr.mxu0 0.0
    %629 = vmatpush1.msra.mxu0 %v85
    %630 = vmatprep.subr.mxu0 0.0
    %631 = vmatpush1.msra.mxu0 %v84
    %632 = vmatprep.subr.mxu0 0.0
    %633 = vmatpush1.msra.mxu0 %v83
    %634 = vmatprep.subr.mxu0 0.0
    %635 = vmatpush1.msra.mxu0 %v82
    %636 = vmatprep.subr.mxu0 0.0
    %637 = vmatpush1.msra.mxu0 %v81
    %638 = vmatprep.subr.mxu0 0.0
    %639 = vmatpush1.msra.mxu0 %v80
    %640 = vmatprep.subr.mxu0 0.0
    %641 = vmatpush1.msra.mxu0 %v79
    %642 = vmatprep.subr.mxu0 0.0
    %643 = vmatpush1.msra.mxu0 %v78
    %644 = vmatprep.subr.mxu0 0.0
    %645 = vmatpush2.msra.mxu0 0.0
    %646 = vmatprep.subr.mxu0 0.0
    %647 = vmatpush2.msra.mxu0 0.0
    %648 = vmatprep.subr.mxu0 0.0
    %649 = vmatpush2.msra.mxu0 0.0
    %650 = vmatprep.subr.mxu0 0.0
    %651 = vmatpush2.msra.mxu0 0.0
    %652 = vmatprep.subr.mxu0 0.0
    %653 = vmatpush2.msra.mxu0 0.0
    %654 = vmatprep.subr.mxu0 0.0
    %655 = vmatpush2.msra.mxu0 0.0
    %656 = vmatprep.subr.mxu0 0.0
    %657 = vmatpush2.msra.mxu0 0.0
    %658 = vmatprep.subr.mxu0 0.0
    %659 = vmatpush2.msra.mxu0 0.0
    %660 = vmatprep.subr.mxu0 0.0
    %661 = vmatpush2.msra.mxu0 0.0
    %662 = vmatprep.subr.mxu0 0.0
    %663 = vmatpush2.msra.mxu0 0.0
    %664 = vmatprep.subr.mxu0 0.0
    %665 = vmatpush2.msra.mxu0 0.0
    %666 = vmatprep.subr.mxu0 0.0
    %667 = vmatpush2.msra.mxu0 0.0
    %668 = vmatprep.subr.mxu0 0.0
    %669 = vmatpush2.msra.mxu0 0.0
    %670 = vmatprep.subr.mxu0 0.0
    %671 = vmatpush2.msra.mxu0 0.0
    %672 = vmatprep.subr.mxu0 0.0
    %673 = vmatpush2.msra.mxu0 0.0
    %674 = vmatprep.subr.mxu0 0.0
    %675 = vmatpush2.msra.mxu0 0.0
    %676 = vmatprep.mubr.f32.mxu0 0.0
    %677 = vmatmul.mubr.f32.gmra.mxu0 %v538
    %v678 = vpop.f32.mrf.mxu0
    %v679 = vadd.f32 %v106, %v678
    %v680 = vpop.f32.mrf.mxu0
    %681 = vdwg.mxu0
    %v682 = vmax.f32 %v679, 0.0
    %v683 = vadd.f32 %v539, %v682
    %684 = vmatprep.subr.mxu0 0.0
    %685 = vmatpush1.msra.mxu0 %v93
    %686 = vmatprep.subr.mxu0 0.0
    %687 = vmatpush1.msra.mxu0 %v92
    %688 = vmatprep.subr.mxu0 0.0
    %689 = vmatpush1.msra.mxu0 %v91
    %690 = vmatprep.subr.mxu0 0.0
    %691 = vmatpush1.msra.mxu0 %v90
    %692 = vmatprep.subr.mxu0 0.0
    %693 = vmatpush1.msra.mxu0 %v89
    %694 = vmatprep.subr.mxu0 0.0
    %695 = vmatpush1.msra.mxu0 %v88
    %696 = vmatprep.subr.mxu0 0.0
    %697 = vmatpush1.msra.mxu0 %v87
    %698 = vmatprep.subr.mxu0 0.0
    %699 = vmatpush1.msra.mxu0 %v86
    %700 = vmatprep.subr.mxu0 0.0
    %701 = vmatpush1.msra.mxu0 %v85
    %702 = vmatprep.subr.mxu0 0.0
    %703 = vmatpush1.msra.mxu0 %v84
    %704 = vmatprep.subr.mxu0 0.0
    %705 = vmatpush1.msra.mxu0 %v83
    %706 = vmatprep.subr.mxu0 0.0
    %707 = vmatpush1.msra.mxu0 %v82
    %708 = vmatprep.subr.mxu0 0.0
    %709 = vmatpush1.msra.mxu0 %v81
    %710 = vmatprep.subr.mxu0 0.0
    %711 = vmatpush1.msra.mxu0 %v80
    %712 = vmatprep.subr.mxu0 0.0
    %713 = vmatpush1.msra.mxu0 %v79
    %714 = vmatprep.subr.mxu0 0.0
    %715 = vmatpush1.msra.mxu0 %v78
    %716 = vmatprep.subr.mxu0 0.0
    %717 = vmatpush2.msra.mxu0 0.0
    %718 = vmatprep.subr.mxu0 0.0
    %719 = vmatpush2.msra.mxu0 0.0
    %720 = vmatprep.subr.mxu0 0.0
    %721 = vmatpush2.msra.mxu0 0.0
    %722 = vmatprep.subr.mxu0 0.0
    %723 = vmatpush2.msra.mxu0 0.0
    %724 = vmatprep.subr.mxu0 0.0
    %725 = vmatpush2.msra.mxu0 0.0
    %726 = vmatprep.subr.mxu0 0.0
    %727 = vmatpush2.msra.mxu0 0.0
    %728 = vmatprep.subr.mxu0 0.0
    %729 = vmatpush2.msra.mxu0 0.0
    %730 = vmatprep.subr.mxu0 0.0
    %731 = vmatpush2.msra.mxu0 0.0
    %732 = vmatprep.subr.mxu0 0.0
    %733 = vmatpush2.msra.mxu0 0.0
    %734 = vmatprep.subr.mxu0 0.0
    %735 = vmatpush2.msra.mxu0 0.0
    %736 = vmatprep.subr.mxu0 0.0
    %737 = vmatpush2.msra.mxu0 0.0
    %738 = vmatprep.subr.mxu0 0.0
    %739 = vmatpush2.msra.mxu0 0.0
    %740 = vmatprep.subr.mxu0 0.0
    %741 = vmatpush2.msra.mxu0 0.0
    %742 = vmatprep.subr.mxu0 0.0
    %743 = vmatpush2.msra.mxu0 0.0
    %744 = vmatprep.subr.mxu0 0.0
    %745 = vmatpush2.msra.mxu0 0.0
    %746 = vmatprep.subr.mxu0 0.0
    %747 = vmatpush2.msra.mxu0 0.0
    %748 = vmatprep.mubr.f32.mxu0 0.0
    %749 = vmatmul.mubr.f32.gmra.mxu0 %v610
    %v750 = vpop.f32.mrf.mxu0
    %v751 = vadd.f32 %v106, %v750
    %v752 = vpop.f32.mrf.mxu0
    %753 = vdwg.mxu0
    %v754 = vmax.f32 %v751, 0.0
    %v755 = vadd.f32 %v611, %v754
    %756 = vmatprep.subr.mxu0 0.0
    %757 = vmatpush1.msra.mxu0 %v93
    %758 = vmatprep.subr.mxu0 0.0
    %759 = vmatpush1.msra.mxu0 %v92
    %760 = vmatprep.subr.mxu0 0.0
    %761 = vmatpush1.msra.mxu0 %v91
    %762 = vmatprep.subr.mxu0 0.0
    %763 = vmatpush1.msra.mxu0 %v90
    %764 = vmatprep.subr.mxu0 0.0
    %765 = vmatpush1.msra.mxu0 %v89
    %766 = vmatprep.subr.mxu0 0.0
    %767 = vmatpush1.msra.mxu0 %v88
    %768 = vmatprep.subr.mxu0 0.0
    %769 = vmatpush1.msra.mxu0 %v87
    %770 = vmatprep.subr.mxu0 0.0
    %771 = vmatpush1.msra.mxu0 %v86
    %772 = vmatprep.subr.mxu0 0.0
    %773 = vmatpush1.msra.mxu0 %v85
    %774 = vmatprep.subr.mxu0 0.0
    %775 = vmatpush1.msra.mxu0 %v84
    %776 = vmatprep.subr.mxu0 0.0
    %777 = vmatpush1.msra.mxu0 %v83
    %778 = vmatprep.subr.mxu0 0.0
    %779 = vmatpush1.msra.mxu0 %v82
    %780 = vmatprep.subr.mxu0 0.0
    %781 = vmatpush1.msra.mxu0 %v81
    %782 = vmatprep.subr.mxu0 0.0
    %783 = vmatpush1.msra.mxu0 %v80
    %784 = vmatprep.subr.mxu0 0.0
    %785 = vmatpush1.msra.mxu0 %v79
    %786 = vmatprep.subr.mxu0 0.0
    %787 = vmatpush1.msra.mxu0 %v78
    %788 = vmatprep.subr.mxu0 0.0
    %789 = vmatpush2.msra.mxu0 0.0
    %790 = vmatprep.subr.mxu0 0.0
    %791 = vmatpush2.msra.mxu0 0.0
    %792 = vmatprep.subr.mxu0 0.0
    %793 = vmatpush2.msra.mxu0 0.0
    %794 = vmatprep.subr.mxu0 0.0
    %795 = vmatpush2.msra.mxu0 0.0
    %796 = vmatprep.subr.mxu0 0.0
    %797 = vmatpush2.msra.mxu0 0.0
    %798 = vmatprep.subr.mxu0 0.0
    %799 = vmatpush2.msra.mxu0 0.0
    %800 = vmatprep.subr.mxu0 0.0
    %801 = vmatpush2.msra.mxu0 0.0
    %802 = vmatprep.subr.mxu0 0.0
    %803 = vmatpush2.msra.mxu0 0.0
    %804 = vmatprep.subr.mxu0 0.0
    %805 = vmatpush2.msra.mxu0 0.0
    %806 = vmatprep.subr.mxu0 0.0
    %807 = vmatpush2.msra.mxu0 0.0
    %808 = vmatprep.subr.mxu0 0.0
    %809 = vmatpush2.msra.mxu0 0.0
    %810 = vmatprep.subr.mxu0 0.0
    %811 = vmatpush2.msra.mxu0 0.0
    %812 = vmatprep.subr.mxu0 0.0
    %813 = vmatpush2.msra.mxu0 0.0
    %814 = vmatprep.subr.mxu0 0.0
    %815 = vmatpush2.msra.mxu0 0.0
    %816 = vmatprep.subr.mxu0 0.0
    %817 = vmatpush2.msra.mxu0 0.0
    %818 = vmatprep.subr.mxu0 0.0
    %819 = vmatpush2.msra.mxu0 0.0
    %820 = vmatprep.mubr.f32.mxu0 0.0
    %821 = vmatmul.mubr.f32.gmra.mxu0 %v682
    %v822 = vpop.f32.mrf.mxu0
    %v823 = vadd.f32 %v106, %v822
    %v824 = vpop.f32.mrf.mxu0
    %825 = vdwg.mxu0
    %v826 = vmax.f32 %v823, 0.0
    %v827 = vadd.f32 %v683, %v826
    %828 = vmatprep.subr.mxu0 0.0
    %829 = vmatpush1.msra.mxu0 %v93
    %830 = vmatprep.subr.mxu0 0.0
    %831 = vmatpush1.msra.mxu0 %v92
    %832 = vmatprep.subr.mxu0 0.0
    %833 = vmatpush1.msra.mxu0 %v91
    %834 = vmatprep.subr.mxu0 0.0
    %835 = vmatpush1.msra.mxu0 %v90
    %836 = vmatprep.subr.mxu0 0.0
    %837 = vmatpush1.msra.mxu0 %v89
    %838 = vmatprep.subr.mxu0 0.0
    %839 = vmatpush1.msra.mxu0 %v88
    %840 = vmatprep.subr.mxu0 0.0
    %841 = vmatpush1.msra.mxu0 %v87
    %842 = vmatprep.subr.mxu0 0.0
    %843 = vmatpush1.msra.mxu0 %v86
    %844 = vmatprep.subr.mxu0 0.0
    %845 = vmatpush1.msra.mxu0 %v85
    %846 = vmatprep.subr.mxu0 0.0
    %847 = vmatpush1.msra.mxu0 %v84
    %848 = vmatprep.subr.mxu0 0.0
    %849 = vmatpush1.msra.mxu0 %v83
    %850 = vmatprep.subr.mxu0 0.0
    %851 = vmatpush1.msra.mxu0 %v82
    %852 = vmatprep.subr.mxu0 0.0
    %853 = vmatpush1.msra.mxu0 %v81
    %854 = vmatprep.subr.mxu0 0.0
    %855 = vmatpush1.msra.mxu0 %v80
    %856 = vmatprep.subr.mxu0 0.0
    %857 = vmatpush1.msra.mxu0 %v79
    %858 = vmatprep.subr.mxu0 0.0
    %859 = vmatpush1.msra.mxu0 %v78
    %860 = vmatprep.subr.mxu0 0.0
    %861 = vmatpush2.msra.mxu0 0.0
    %862 = vmatprep.subr.mxu0 0.0
    %863 = vmatpush2.msra.mxu0 0.0
    %864 = vmatprep.subr.mxu0 0.0
    %865 = vmatpush2.msra.mxu0 0.0
    %866 = vmatprep.subr.mxu0 0.0
    %867 = vmatpush2.msra.mxu0 0.0
    %868 = vmatprep.subr.mxu0 0.0
    %869 = vmatpush2.msra.mxu0 0.0
    %870 = vmatprep.subr.mxu0 0.0
    %871 = vmatpush2.msra.mxu0 0.0
    %872 = vmatprep.subr.mxu0 0.0
    %873 = vmatpush2.msra.mxu0 0.0
    %874 = vmatprep.subr.mxu0 0.0
    %875 = vmatpush2.msra.mxu0 0.0
    %876 = vmatprep.subr.mxu0 0.0
    %877 = vmatpush2.msra.mxu0 0.0
    %878 = vmatprep.subr.mxu0 0.0
    %879 = vmatpush2.msra.mxu0 0.0
    %880 = vmatprep.subr.mxu0 0.0
    %881 = vmatpush2.msra.mxu0 0.0
    %882 = vmatprep.subr.mxu0 0.0
    %883 = vmatpush2.msra.mxu0 0.0
    %884 = vmatprep.subr.mxu0 0.0
    %885 = vmatpush2.msra.mxu0 0.0
    %886 = vmatprep.subr.mxu0 0.0
    %887 = vmatpush2.msra.mxu0 0.0
    %888 = vmatprep.subr.mxu0 0.0
    %889 = vmatpush2.msra.mxu0 0.0
    %890 = vmatprep.subr.mxu0 0.0
    %891 = vmatpush2.msra.mxu0 0.0
    %892 = vmatprep.mubr.f32.mxu0 0.0
    %893 = vmatmul.mubr.f32.gmra.mxu0 %v754
    %v894 = vpop.f32.mrf.mxu0
    %v895 = vadd.f32 %v106, %v894
    %v896 = vpop.f32.mrf.mxu0
    %897 = vdwg.mxu0
    %v898 = vmax.f32 %v895, 0.0
    %v899 = vadd.f32 %v755, %v898
    %900 = vmatprep.subr.mxu0 0.0
    %901 = vmatpush1.msra.mxu0 %v93
    %902 = vmatprep.subr.mxu0 0.0
    %903 = vmatpush1.msra.mxu0 %v92
    %904 = vmatprep.subr.mxu0 0.0
    %905 = vmatpush1.msra.mxu0 %v91
    %906 = vmatprep.subr.mxu0 0.0
    %907 = vmatpush1.msra.mxu0 %v90
    %908 = vmatprep.subr.mxu0 0.0
    %909 = vmatpush1.msra.mxu0 %v89
    %910 = vmatprep.subr.mxu0 0.0
    %911 = vmatpush1.msra.mxu0 %v88
    %912 = vmatprep.subr.mxu0 0.0
    %913 = vmatpush1.msra.mxu0 %v87
    %914 = vmatprep.subr.mxu0 0.0
    %915 = vmatpush1.msra.mxu0 %v86
    %916 = vmatprep.subr.mxu0 0.0
    %917 = vmatpush1.msra.mxu0 %v85
    %918 = vmatprep.subr.mxu0 0.0
    %919 = vmatpush1.msra.mxu0 %v84
    %920 = vmatprep.subr.mxu0 0.0
    %921 = vmatpush1.msra.mxu0 %v83
    %922 = vmatprep.subr.mxu0 0.0
    %923 = vmatpush1.msra.mxu0 %v82
    %924 = vmatprep.subr.mxu0 0.0
    %925 = vmatpush1.msra.mxu0 %v81
    %926 = vmatprep.subr.mxu0 0.0
    %927 = vmatpush1.msra.mxu0 %v80
    %928 = vmatprep.subr.mxu0 0.0
    %929 = vmatpush1.msra.mxu0 %v79
    %930 = vmatprep.subr.mxu0 0.0
    %931 = vmatpush1.msra.mxu0 %v78
    %932 = vmatprep.subr.mxu0 0.0
    %933 = vmatpush2.msra.mxu0 0.0
    %934 = vmatprep.subr.mxu0 0.0
    %935 = vmatpush2.msra.mxu0 0.0
    %936 = vmatprep.subr.mxu0 0.0
    %937 = vmatpush2.msra.mxu0 0.0
    %938 = vmatprep.subr.mxu0 0.0
    %939 = vmatpush2.msra.mxu0 0.0
    %940 = vmatprep.subr.mxu0 0.0
    %941 = vmatpush2.msra.mxu0 0.0
    %942 = vmatprep.subr.mxu0 0.0
    %943 = vmatpush2.msra.mxu0 0.0
    %944 = vmatprep.subr.mxu0 0.0
    %945 = vmatpush2.msra.mxu0 0.0
    %946 = vmatprep.subr.mxu0 0.0
    %947 = vmatpush2.msra.mxu0 0.0
    %948 = vmatprep.subr.mxu0 0.0
    %949 = vmatpush2.msra.mxu0 0.0
    %950 = vmatprep.subr.mxu0 0.0
    %951 = vmatpush2.msra.mxu0 0.0
    %952 = vmatprep.subr.mxu0 0.0
    %953 = vmatpush2.msra.mxu0 0.0
    %954 = vmatprep.subr.mxu0 0.0
    %955 = vmatpush2.msra.mxu0 0.0
    %956 = vmatprep.subr.mxu0 0.0
    %957 = vmatpush2.msra.mxu0 0.0
    %958 = vmatprep.subr.mxu0 0.0
    %959 = vmatpush2.msra.mxu0 0.0
    %960 = vmatprep.subr.mxu0 0.0
    %961 = vmatpush2.msra.mxu0 0.0
    %962 = vmatprep.subr.mxu0 0.0
    %963 = vmatpush2.msra.mxu0 0.0
    %964 = vmatprep.mubr.f32.mxu0 0.0
    %965 = vmatmul.mubr.f32.gmra.mxu0 %v826
    %v966 = vpop.f32.mrf.mxu0
    %v967 = vadd.f32 %v106, %v966
    %v968 = vpop.f32.mrf.mxu0
    %969 = vdwg.mxu0
    %v970 = vmax.f32 %v967, 0.0
    %v971 = vadd.f32 %v827, %v970
    %972 = vmatprep.subr.mxu0 0.0
    %973 = vmatpush1.msra.mxu0 %v93
    %974 = vmatprep.subr.mxu0 0.0
    %975 = vmatpush1.msra.mxu0 %v92
    %976 = vmatprep.subr.mxu0 0.0
    %977 = vmatpush1.msra.mxu0 %v91
    %978 = vmatprep.subr.mxu0 0.0
    %979 = vmatpush1.msra.mxu0 %v90
    %980 = vmatprep.subr.mxu0 0.0
    %981 = vmatpush1.msra.mxu0 %v89
    %982 = vmatprep.subr.mxu0 0.0
    %983 = vmatpush1.msra.mxu0 %v88
    %984 = vmatprep.subr.mxu0 0.0
    %985 = vmatpush1.msra.mxu0 %v87
    %986 = vmatprep.subr.mxu0 0.0
    %987 = vmatpush1.msra.mxu0 %v86
    %988 = vmatprep.subr.mxu0 0.0
    %989 = vmatpush1.msra.mxu0 %v85
    %990 = vmatprep.subr.mxu0 0.0
    %991 = vmatpush1.msra.mxu0 %v84
    %992 = vmatprep.subr.mxu0 0.0
    %993 = vmatpush1.msra.mxu0 %v83
    %994 = vmatprep.subr.mxu0 0.0
    %995 = vmatpush1.msra.mxu0 %v82
    %996 = vmatprep.subr.mxu0 0.0
    %997 = vmatpush1.msra.mxu0 %v81
    %998 = vmatprep.subr.mxu0 0.0
    %999 = vmatpush1.msra.mxu0 %v80
    %1000 = vmatprep.subr.mxu0 0.0
    %1001 = vmatpush1.msra.mxu0 %v79
    %1002 = vmatprep.subr.mxu0 0.0
    %1003 = vmatpush1.msra.mxu0 %v78
    %1004 = vmatprep.subr.mxu0 0.0
    %1005 = vmatpush2.msra.mxu0 0.0
    %1006 = vmatprep.subr.mxu0 0.0
    %1007 = vmatpush2.msra.mxu0 0.0
    %1008 = vmatprep.subr.mxu0 0.0
    %1009 = vmatpush2.msra.mxu0 0.0
    %1010 = vmatprep.subr.mxu0 0.0
    %1011 = vmatpush2.msra.mxu0 0.0
    %1012 = vmatprep.subr.mxu0 0.0
    %1013 = vmatpush2.msra.mxu0 0.0
    %1014 = vmatprep.subr.mxu0 0.0
    %1015 = vmatpush2.msra.mxu0 0.0
    %1016 = vmatprep.subr.mxu0 0.0
    %1017 = vmatpush2.msra.mxu0 0.0
    %1018 = vmatprep.subr.mxu0 0.0
    %1019 = vmatpush2.msra.mxu0 0.0
    %1020 = vmatprep.subr.mxu0 0.0
    %1021 = vmatpush2.msra.mxu0 0.0
    %1022 = vmatprep.subr.mxu0 0.0
    %1023 = vmatpush2.msra.mxu0 0.0
    %1024 = vmatprep.subr.mxu0 0.0
    %1025 = vmatpush2.msra.mxu0 0.0
    %1026 = vmatprep.subr.mxu0 0.0
    %1027 = vmatpush2.msra.mxu0 0.0
    %1028 = vmatprep.subr.mxu0 0.0
    %1029 = vmatpush2.msra.mxu0 0.0
    %1030 = vmatprep.subr.mxu0 0.0
    %1031 = vmatpush2.msra.mxu0 0.0
    %1032 = vmatprep.subr.mxu0 0.0
    %1033 = vmatpush2.msra.mxu0 0.0
    %1034 = vmatprep.subr.mxu0 0.0
    %1035 = vmatpush2.msra.mxu0 0.0
    %1036 = vmatprep.mubr.f32.mxu0 0.0
    %1037 = vmatmul.mubr.f32.gmra.mxu0 %v898
    %v1038 = vpop.f32.mrf.mxu0
    %v1039 = vadd.f32 %v106, %v1038
    %v1040 = vpop.f32.mrf.mxu0
    %1041 = vdwg.mxu0
    %v1042 = vmax.f32 %v1039, 0.0
    %v1043 = vadd.f32 %v899, %v1042
    %1044 = vmatprep.subr.mxu0 0.0
    %1045 = vmatpush1.msra.mxu0 %v93
    %1046 = vmatprep.subr.mxu0 0.0
    %1047 = vmatpush1.msra.mxu0 %v92
    %1048 = vmatprep.subr.mxu0 0.0
    %1049 = vmatpush1.msra.mxu0 %v91
    %1050 = vmatprep.subr.mxu0 0.0
    %1051 = vmatpush1.msra.mxu0 %v90
    %1052 = vmatprep.subr.mxu0 0.0
    %1053 = vmatpush1.msra.mxu0 %v89
    %1054 = vmatprep.subr.mxu0 0.0
    %1055 = vmatpush1.msra.mxu0 %v88
    %1056 = vmatprep.subr.mxu0 0.0
    %1057 = vmatpush1.msra.mxu0 %v87
    %1058 = vmatprep.subr.mxu0 0.0
    %1059 = vmatpush1.msra.mxu0 %v86
    %1060 = vmatprep.subr.mxu0 0.0
    %1061 = vmatpush1.msra.mxu0 %v85
    %1062 = vmatprep.subr.mxu0 0.0
    %1063 = vmatpush1.msra.mxu0 %v84
    %1064 = vmatprep.subr.mxu0 0.0
    %1065 = vmatpush1.msra.mxu0 %v83
    %1066 = vmatprep.subr.mxu0 0.0
    %1067 = vmatpush1.msra.mxu0 %v82
    %1068 = vmatprep.subr.mxu0 0.0
    %1069 = vmatpush1.msra.mxu0 %v81
    %1070 = vmatprep.subr.mxu0 0.0
    %1071 = vmatpush1.msra.mxu0 %v80
    %1072 = vmatprep.subr.mxu0 0.0
    %1073 = vmatpush1.msra.mxu0 %v79
    %1074 = vmatprep.subr.mxu0 0.0
    %1075 = vmatpush1.msra.mxu0 %v78
    %1076 = vmatprep.subr.mxu0 0.0
    %1077 = vmatpush2.msra.mxu0 0.0
    %1078 = vmatprep.subr.mxu0 0.0
    %1079 = vmatpush2.msra.mxu0 0.0
    %1080 = vmatprep.subr.mxu0 0.0
    %1081 = vmatpush2.msra.mxu0 0.0
    %1082 = vmatprep.subr.mxu0 0.0
    %1083 = vmatpush2.msra.mxu0 0.0
    %1084 = vmatprep.subr.mxu0 0.0
    %1085 = vmatpush2.msra.mxu0 0.0
    %1086 = vmatprep.subr.mxu0 0.0
    %1087 = vmatpush2.msra.mxu0 0.0
    %1088 = vmatprep.subr.mxu0 0.0
    %1089 = vmatpush2.msra.mxu0 0.0
    %1090 = vmatprep.subr.mxu0 0.0
    %1091 = vmatpush2.msra.mxu0 0.0
    %1092 = vmatprep.subr.mxu0 0.0
    %1093 = vmatpush2.msra.mxu0 0.0
    %1094 = vmatprep.subr.mxu0 0.0
    %1095 = vmatpush2.msra.mxu0 0.0
    %1096 = vmatprep.subr.mxu0 0.0
    %1097 = vmatpush2.msra.mxu0 0.0
    %1098 = vmatprep.subr.mxu0 0.0
    %1099 = vmatpush2.msra.mxu0 0.0
    %1100 = vmatprep.subr.mxu0 0.0
    %1101 = vmatpush2.msra.mxu0 0.0
    %1102 = vmatprep.subr.mxu0 0.0
    %1103 = vmatpush2.msra.mxu0 0.0
    %1104 = vmatprep.subr.mxu0 0.0
    %1105 = vmatpush2.msra.mxu0 0.0
    %1106 = vmatprep.subr.mxu0 0.0
    %1107 = vmatpush2.msra.mxu0 0.0
    %1108 = vmatprep.mubr.f32.mxu0 0.0
    %1109 = vmatmul.mubr.f32.gmra.mxu0 %v970
    %v1110 = vpop.f32.mrf.mxu0
    %v1111 = vadd.f32 %v106, %v1110
    %v1112 = vpop.f32.mrf.mxu0
    %1113 = vdwg.mxu0
    %v1114 = vmax.f32 %v1111, 0.0
    %v1115 = vadd.f32 %v971, %v1114
    %1116 = vmatprep.subr.mxu0 0.0
    %1117 = vmatpush1.msra.mxu0 %v93
    %1118 = vmatprep.subr.mxu0 0.0
    %1119 = vmatpush1.msra.mxu0 %v92
    %1120 = vmatprep.subr.mxu0 0.0
    %1121 = vmatpush1.msra.mxu0 %v91
    %1122 = vmatprep.subr.mxu0 0.0
    %1123 = vmatpush1.msra.mxu0 %v90
    %1124 = vmatprep.subr.mxu0 0.0
    %1125 = vmatpush1.msra.mxu0 %v89
    %1126 = vmatprep.subr.mxu0 0.0
    %1127 = vmatpush1.msra.mxu0 %v88
    %1128 = vmatprep.subr.mxu0 0.0
    %1129 = vmatpush1.msra.mxu0 %v87
    %1130 = vmatprep.subr.mxu0 0.0
    %1131 = vmatpush1.msra.mxu0 %v86
    %1132 = vmatprep.subr.mxu0 0.0
    %1133 = vmatpush1.msra.mxu0 %v85
    %1134 = vmatprep.subr.mxu0 0.0
    %1135 = vmatpush1.msra.mxu0 %v84
    %1136 = vmatprep.subr.mxu0 0.0
    %1137 = vmatpush1.msra.mxu0 %v83
    %1138 = vmatprep.subr.mxu0 0.0
    %1139 = vmatpush1.msra.mxu0 %v82
    %1140 = vmatprep.subr.mxu0 0.0
    %1141 = vmatpush1.msra.mxu0 %v81
    %1142 = vmatprep.subr.mxu0 0.0
    %1143 = vmatpush1.msra.mxu0 %v80
    %1144 = vmatprep.subr.mxu0 0.0
    %1145 = vmatpush1.msra.mxu0 %v79
    %1146 = vmatprep.subr.mxu0 0.0
    %1147 = vmatpush1.msra.mxu0 %v78
    %1148 = vmatprep.subr.mxu0 0.0
    %1149 = vmatpush2.msra.mxu0 0.0
    %1150 = vmatprep.subr.mxu0 0.0
    %1151 = vmatpush2.msra.mxu0 0.0
    %1152 = vmatprep.subr.mxu0 0.0
    %1153 = vmatpush2.msra.mxu0 0.0
    %1154 = vmatprep.subr.mxu0 0.0
    %1155 = vmatpush2.msra.mxu0 0.0
    %1156 = vmatprep.subr.mxu0 0.0
    %1157 = vmatpush2.msra.mxu0 0.0
    %1158 = vmatprep.subr.mxu0 0.0
    %1159 = vmatpush2.msra.mxu0 0.0
    %1160 = vmatprep.subr.mxu0 0.0
    %1161 = vmatpush2.msra.mxu0 0.0
    %1162 = vmatprep.subr.mxu0 0.0
    %1163 = vmatpush2.msra.mxu0 0.0
    %1164 = vmatprep.subr.mxu0 0.0
    %1165 = vmatpush2.msra.mxu0 0.0
    %1166 = vmatprep.subr.mxu0 0.0
    %1167 = vmatpush2.msra.mxu0 0.0
    %1168 = vmatprep.subr.mxu0 0.0
    %1169 = vmatpush2.msra.mxu0 0.0
    %1170 = vmatprep.subr.mxu0 0.0
    %1171 = vmatpush2.msra.mxu0 0.0
    %1172 = vmatprep.subr.mxu0 0.0
    %1173 = vmatpush2.msra.mxu0 0.0
    %1174 = vmatprep.subr.mxu0 0.0
    %1175 = vmatpush2.msra.mxu0 0.0
    %1176 = vmatprep.subr.mxu0 0.0
    %1177 = vmatpush2.msra.mxu0 0.0
    %1178 = vmatprep.subr.mxu0 0.0
    %1179 = vmatpush2.msra.mxu0 0.0
    %1180 = vmatprep.mubr.f32.mxu0 0.0
    %1181 = vmatmul.mubr.f32.gmra.mxu0 %v1042
    %v1182 = vpop.f32.mrf.mxu0
    %v1183 = vadd.f32 %v106, %v1182
    %v1184 = vpop.f32.mrf.mxu0
    %1185 = vdwg.mxu0
    %v1186 = vmax.f32 %v1183, 0.0
    %v1187 = vadd.f32 %v1043, %v1186
    %1188 = vmatprep.subr.mxu0 0.0
    %1189 = vmatpush1.msra.mxu0 %v93
    %1190 = vmatprep.subr.mxu0 0.0
    %1191 = vmatpush1.msra.mxu0 %v92
    %1192 = vmatprep.subr.mxu0 0.0
    %1193 = vmatpush1.msra.mxu0 %v91
    %1194 = vmatprep.subr.mxu0 0.0
    %1195 = vmatpush1.msra.mxu0 %v90
    %1196 = vmatprep.subr.mxu0 0.0
    %1197 = vmatpush1.msra.mxu0 %v89
    %1198 = vmatprep.subr.mxu0 0.0
    %1199 = vmatpush1.msra.mxu0 %v88
    %1200 = vmatprep.subr.mxu0 0.0
    %1201 = vmatpush1.msra.mxu0 %v87
    %1202 = vmatprep.subr.mxu0 0.0
    %1203 = vmatpush1.msra.mxu0 %v86
    %1204 = vmatprep.subr.mxu0 0.0
    %1205 = vmatpush1.msra.mxu0 %v85
    %1206 = vmatprep.subr.mxu0 0.0
    %1207 = vmatpush1.msra.mxu0 %v84
    %1208 = vmatprep.subr.mxu0 0.0
    %1209 = vmatpush1.msra.mxu0 %v83
    %1210 = vmatprep.subr.mxu0 0.0
    %1211 = vmatpush1.msra.mxu0 %v82
    %1212 = vmatprep.subr.mxu0 0.0
    %1213 = vmatpush1.msra.mxu0 %v81
    %1214 = vmatprep.subr.mxu0 0.0
    %1215 = vmatpush1.msra.mxu0 %v80
    %1216 = vmatprep.subr.mxu0 0.0
    %1217 = vmatpush1.msra.mxu0 %v79
    %1218 = vmatprep.subr.mxu0 0.0
    %1219 = vmatpush1.msra.mxu0 %v78
    %1220 = vmatprep.subr.mxu0 0.0
    %1221 = vmatpush2.msra.mxu0 0.0
    %1222 = vmatprep.subr.mxu0 0.0
    %1223 = vmatpush2.msra.mxu0 0.0
    %1224 = vmatprep.subr.mxu0 0.0
    %1225 = vmatpush2.msra.mxu0 0.0
    %1226 = vmatprep.subr.mxu0 0.0
    %1227 = vmatpush2.msra.mxu0 0.0
    %1228 = vmatprep.subr.mxu0 0.0
    %1229 = vmatpush2.msra.mxu0 0.0
    %1230 = vmatprep.subr.mxu0 0.0
    %1231 = vmatpush2.msra.mxu0 0.0
    %1232 = vmatprep.subr.mxu0 0.0
    %1233 = vmatpush2.msra.mxu0 0.0
    %1234 = vmatprep.subr.mxu0 0.0
    %1235 = vmatpush2.msra.mxu0 0.0
    %1236 = vmatprep.subr.mxu0 0.0
    %1237 = vmatpush2.msra.mxu0 0.0
    %1238 = vmatprep.subr.mxu0 0.0
    %1239 = vmatpush2.msra.mxu0 0.0
    %1240 = vmatprep.subr.mxu0 0.0
    %1241 = vmatpush2.msra.mxu0 0.0
    %1242 = vmatprep.subr.mxu0 0.0
    %1243 = vmatpush2.msra.mxu0 0.0
    %1244 = vmatprep.subr.mxu0 0.0
    %1245 = vmatpush2.msra.mxu0 0.0
    %1246 = vmatprep.subr.mxu0 0.0
    %1247 = vmatpush2.msra.mxu0 0.0
    %1248 = vmatprep.subr.mxu0 0.0
    %1249 = vmatpush2.msra.mxu0 0.0
    %1250 = vmatprep.subr.mxu0 0.0
    %1251 = vmatpush2.msra.mxu0 0.0
    %1252 = vmatprep.mubr.f32.mxu0 0.0
    %1253 = vmatmul.mubr.f32.gmra.mxu0 %v1114
    %v1254 = vpop.f32.mrf.mxu0
    %v1255 = vadd.f32 %v106, %v1254
    %v1256 = vpop.f32.mrf.mxu0
    %1257 = vdwg.mxu0
    %v1258 = vmax.f32 %v1255, 0.0
    %v1259 = vadd.f32 %v1115, %v1258
    %v1260 = vmul.f32 %v1187, 0.125
    %1261 = vst [vmem:[#allocation8] sm:$0xff] %v1260
    %v1262 = vmul.f32 %v1259, 0.125
    %1263 = vst [vmem:[#allocation8 + $0x8] sm:$0xff] %v1262
    // Predicated region
    $region34: #{tpu_custom_call.1} parent=1 // pred_check
      _
    $region35: #{tpu_custom_call.1} parent=1 // pred_check_branch
      %1265 = sbr.rel (0) target = $region37
    $region36: #{tpu_custom_call.1} parent=1 // pred_region
      %s1267 = ssub.s32 256, 256
      %1268 = vsyncadd [#allocation4], %s1267
      %s1269 = sshll.u32 [#allocation8], 4
      %s1270 = int_to_ptr.vmem [resolvable:$true] %s1269
      %1275 = dma.vmem_to_hbm [thread:$0]  %s1270, 256, %s5, [#allocation4], 128, 128, 8
    $region37: #{tpu_custom_call.1} parent=1 // pred_fallthru
      _
    // Predicated region
    $region38: #{tpu_custom_call.1} parent=1 // pred_check
      _
    $region39: #{tpu_custom_call.1} parent=1 // pred_check_branch
      %1277 = sbr.rel (0) target = $region41
    $region40: #{tpu_custom_call.1} parent=1 // pred_region
      %1278 = dma.done [#allocation4], 256
    $region41: #{tpu_custom_call.1} parent=1 // pred_fallthru
      _
    %1279 = vsyncpa [#allocation3], 1
    %1280 = vsyncpa [#allocation6], 1
    %1281 = vsyncpa [#allocation4], 1

</llo_original>
